<compile_context>
chip_gen: v7x
topology: tpu7x:2x2x1
jax: 0.10.0
libtpu: 0.0.40
codegen_flags: <defaults>
</compile_context>

<pallas_src>
import numpy as np
import jax
import jax.numpy as jnp
from jax import lax
from jax.experimental import pallas as pl
from jax.experimental.pallas import tpu as pltpu  # noqa: F401

# ----------------------------- configuration --------------------------------
B = 2            # batch
T = 8            # sequence length
OBS = 16         # obs_dim
D = 32           # in_features (divisible by num_heads -> no padding)
HEADS = 4
HEAD_DIM = D // HEADS
LAYERS = 2
FFN = 64         # encoder_hidden_size
FC = 32          # fc_hidden_size
PLAN = 8         # plan_features
F32 = jnp.float32
BF16 = jnp.bfloat16

BT = B * T                   # 16 rows processed at once
STACK = HEADS * BT           # 64 head-stacked rows for attention scores
OUT_COLS = FC + 2 * PLAN     # merged output: [x_emb | dist_mean | dist_std]
SLAB_LANES = 128             # lane width of the packed parameter slab


# --------------------------- parameter slab layout ---------------------------
def _make_layout():
    """Static (row_offset, rows, cols) layout of every tensor inside one bf16 slab.

    Matrices (all row counts are multiples of 16) come first -> every matrix start
    is bf16-tile aligned. The 1-row bias / LayerNorm vectors are packed tight at
    the end (no 8-row padding per entry).
    """
    layout = {}
    row = 0

    def add(name, rows, cols):
        nonlocal row
        layout[name] = (row, rows, cols)
        row += rows

    # --- matrix region ---
    add("pos", BT, D)                      # position embeddings, pre-tiled over B
    add("se_w", OBS, D)                    # state encoder weight
    add("colmask", STACK, D)               # per-head column mask (0/1)
    add("addmask", STACK, BT)              # same-sample additive mask (0/-1e9)
    for l in range(LAYERS):
        add(f"wqkv{l}", D, 3 * D)          # fused q|k|v projection
        add(f"wo{l}", D, D)
        add(f"wff1{l}", D, FFN)
        add(f"wff2{l}", FFN, D)
    add("fc_w", D, FC)
    add("fcs_w", FC, 2 * PLAN)
    # --- small / vector region (packed tight) ---
    add("avg_mat", B, BT)                  # 1/T sequence-averaging matrix
    add("se_b", 1, D)
    add("lnp_g", 1, D)
    add("lnp_b", 1, D)
    for l in range(LAYERS):
        add(f"bqkv{l}", 1, 3 * D)
        add(f"bo{l}", 1, D)
        add(f"ln1g{l}", 1, D)
        add(f"ln1b{l}", 1, D)
        add(f"bff1{l}", 1, FFN)
        add(f"bff2{l}", 1, D)
        add(f"ln2g{l}", 1, D)
        add(f"ln2b{l}", 1, D)
    add("encg", 1, D)
    add("encb", 1, D)
    add("fc_b", 1, FC)
    add("fcs_b", 1, 2 * PLAN)

    total = ((row + 15) // 16) * 16
    return layout, total


LAYOUT, SLAB_ROWS = _make_layout()


# ------------------------------- kernel helpers ------------------------------
def _layernorm(x, g, b, eps=1e-5):
    """One-pass LayerNorm: the two reductions are independent (shorter chain)."""
    m = jnp.mean(x, axis=-1, keepdims=True)
    ex2 = jnp.mean(x * x, axis=-1, keepdims=True)
    var = jnp.maximum(ex2 - m * m, 0.0)
    return (x - m) * lax.rsqrt(var + eps) * g + b


# --------------------------------- kernel ------------------------------------
def plan_recognition_kernel(state_ref, slab_ref, out_ref):
    def ldb(name):                       # bf16 slice (MXU operand / mask)
        start, rows, cols = LAYOUT[name]
        return slab_ref[start:start + rows, 0:cols]

    def ldf(name):                       # f32 view (bias / LN vector / additive mask)
        return ldb(name).astype(F32)

    cmask = ldb("colmask")               # (STACK, D)  0/1, bf16
    amask = ldf("addmask")               # (STACK, BT) 0/-1e9, f32
    avg = ldb("avg_mat")                 # (B, BT) 1/T averaging matrix, bf16

    # ---- state encoder + position embeddings (batched over B*T rows) --------
    x = jnp.dot(state_ref[...].astype(BF16), ldb("se_w"),
                preferred_element_type=F32) + ldf("se_b") + ldf("pos")      # (BT, D)
    x = _layernorm(x, ldf("lnp_g"), ldf("lnp_b"))   # positional_normalize
    # dropout: identity (eval mode)

    # ---- transformer encoder (post-norm, relu FFN) ---------------------------
    for l in range(LAYERS):
        xb = x.astype(BF16)
        # fused QKV: one MXU pass producing (BT, 3D); 1/sqrt(head_dim) is folded
        # into the q columns at pack time.
        qkv = jnp.dot(xb, ldb(f"wqkv{l}"), preferred_element_type=F32) + ldf(f"bqkv{l}")
        q = qkv[:, 0:D].astype(BF16)
        k = qkv[:, D:2 * D].astype(BF16)
        v = qkv[:, 2 * D:3 * D].astype(BF16)

        # stack q per head along sublanes; mask each block to its head's columns
        q_stack = jnp.concatenate([q] * HEADS, axis=0) * cmask              # (STACK, D)

        # one score matmul for all heads / all samples
        s = lax.dot_general(q_stack, k, (((1,), (1,)), ((), ())),
                            preferred_element_type=F32)                     # (STACK, BT)
        s = s + amask                       # same-sample additive mask (one vadd)
        s = s - jnp.max(s, axis=-1, keepdims=True)
        p = jnp.exp(s)
        # TODO(synk): approx reciprocal leaves ~2^-12 relative softmax error vs
        # torch.softmax; use approx=False if exact parity is required.
        p = p * pl.reciprocal(jnp.sum(p, axis=-1, keepdims=True), approx=True)

        # one context matmul for all heads; keep each head's column block and fold
        ctx_stack = jnp.dot(p.astype(BF16), v,
                            preferred_element_type=F32).astype(BF16) * cmask  # (STACK, D)
        ctx = ctx_stack[0:BT, :]
        for h in range(1, HEADS):
            ctx = ctx + ctx_stack[h * BT:(h + 1) * BT, :]                    # (BT, D)

        attn = jnp.dot(ctx, ldb(f"wo{l}"), preferred_element_type=F32) + ldf(f"bo{l}")
        x = _layernorm(x + attn, ldf(f"ln1g{l}"), ldf(f"ln1b{l}"))

        xb = x.astype(BF16)
        h1 = jnp.dot(xb, ldb(f"wff1{l}"), preferred_element_type=F32) + ldf(f"bff1{l}")
        h1 = jnp.maximum(h1, 0.0)                                            # relu
        h2 = jnp.dot(h1.astype(BF16), ldb(f"wff2{l}"),
                     preferred_element_type=F32) + ldf(f"bff2{l}")
        x = _layernorm(x + h2, ldf(f"ln2g{l}"), ldf(f"ln2b{l}"))

    # encoder_normalize = True (final TransformerEncoder norm)
    x = _layernorm(x, ldf("encg"), ldf("encb"))

    # ---- mean over sequence FIRST, then fc (affine commutes with the mean) ----
    xm = jnp.dot(avg, x.astype(BF16), preferred_element_type=F32)            # (B, D)
    xf = jnp.dot(xm.astype(BF16), ldb("fc_w"),
                 preferred_element_type=F32) + ldf("fc_b")                   # (B, FC)

    # ---- dist head (Gaussian: mean / softplus scale) ---------------------------
    # TODO(synk): `dist.build_state` / `dist.forward_dist` are unspecified; a
    # Linear(FC, 2*PLAN) producing (mean, softplus(raw)+eps) Normal params is used.
    s_out = jnp.dot(xf.astype(BF16), ldb("fcs_w"),
                    preferred_element_type=F32) + ldf("fcs_b")               # (B, 2*PLAN)
    mean = s_out[:, :PLAN]
    raw = s_out[:, PLAN:]
    std = jnp.maximum(raw, 0.0) + jnp.log1p(jnp.exp(-jnp.abs(raw))) + 1e-4

    out_ref[...] = jnp.concatenate([xf, mean, std], axis=1)                  # (B, OUT_COLS)


# ------------------------------- host wrapper ---------------------------------
def make_params(key):
    ks = iter(jax.random.split(key, 24))
    s = 0.02
    p = {}
    pos = s * jax.random.normal(next(ks), (T, D), F32)   # rows for positions 0..T-1
    p["pos"] = jnp.tile(pos, (B, 1))                     # repeated over batch -> (B*T, D)
    p["se_w"] = s * jax.random.normal(next(ks), (OBS, D), F32)
    p["se_b"] = jnp.zeros((1, D), F32)
    p["lnp_g"] = jnp.ones((1, D), F32)
    p["lnp_b"] = jnp.zeros((1, D), F32)
    for l in range(LAYERS):
        p[f"wqkv{l}"] = s * jax.random.normal(next(ks), (D, 3 * D), F32)
        p[f"bqkv{l}"] = jnp.zeros((1, 3 * D), F32)
        p[f"wo{l}"] = s * jax.random.normal(next(ks), (D, D), F32)
        p[f"bo{l}"] = jnp.zeros((1, D), F32)
        p[f"ln1g{l}"] = jnp.ones((1, D), F32)
        p[f"ln1b{l}"] = jnp.zeros((1, D), F32)
        p[f"wff1{l}"] = s * jax.random.normal(next(ks), (D, FFN), F32)
        p[f"bff1{l}"] = jnp.zeros((1, FFN), F32)
        p[f"wff2{l}"] = s * jax.random.normal(next(ks), (FFN, D), F32)
        p[f"bff2{l}"] = jnp.zeros((1, D), F32)
        p[f"ln2g{l}"] = jnp.ones((1, D), F32)
        p[f"ln2b{l}"] = jnp.zeros((1, D), F32)
    p["encg"] = jnp.ones((1, D), F32)
    p["encb"] = jnp.zeros((1, D), F32)
    p["fc_w"] = s * jax.random.normal(next(ks), (D, FC), F32)
    p["fc_b"] = jnp.zeros((1, FC), F32)
    p["fcs_w"] = s * jax.random.normal(next(ks), (FC, 2 * PLAN), F32)
    p["fcs_b"] = jnp.zeros((1, 2 * PLAN), F32)
    return p


def _make_constants():
    """Static masks / averaging matrix, hoisted host-side into the slab."""
    row_h = np.arange(STACK)[:, None] // BT
    col_h = np.arange(D)[None, :] // HEAD_DIM
    colmask = (row_h == col_h).astype(np.float32)                         # (STACK, D)
    r = np.arange(STACK)[:, None]
    c = np.arange(BT)[None, :]
    addmask = np.where(((r % BT) // T) == (c // T), 0.0, -1e9).astype(np.float32)
    rb = np.arange(B)[:, None]
    cb = np.arange(BT)[None, :] // T
    avg = np.where(rb == cb, 1.0 / T, 0.0).astype(np.float32)             # (B, BT)
    return {"colmask": colmask, "addmask": addmask, "avg_mat": avg}


def pack_params(params):
    """Pack all parameters + static constants into one (SLAB_ROWS, 128) bf16 slab."""
    slab = np.zeros((SLAB_ROWS, SLAB_LANES), np.float32)
    entries = dict(params)
    entries.update(_make_constants())
    scale = 1.0 / (HEAD_DIM ** 0.5)
    for name, val in entries.items():
        start, rows, cols = LAYOUT[name]
        v = np.asarray(val, dtype=np.float32).reshape(rows, cols).copy()
        if name.startswith("wqkv") or name.startswith("bqkv"):
            v[:, :D] *= scale          # fold 1/sqrt(head_dim) into the q projection
        slab[start:start + rows, 0:cols] = v
    return jnp.asarray(slab, dtype=jnp.bfloat16)


@jax.jit
def plan_recognition_forward(state, slab):
    state2d = state.reshape(BT, OBS)          # batch linear layers over B*T rows
    out = pl.pallas_call(
        plan_recognition_kernel,
        out_shape=jax.ShapeDtypeStruct((B, OUT_COLS), F32),
    )(state2d, slab)
    x_emb = out[:, :FC]
    dist_mean = out[:, FC:FC + PLAN]
    dist_std = out[:, FC + PLAN:]
    # returns ((Normal mean, Normal scale), x)  -- mirrors (state_dist, x)
    return (dist_mean, dist_std), x_emb


# ----------------------------------- main -------------------------------------
if __name__ == "__main__":
    key = jax.random.PRNGKey(0)
    k_state, k_params = jax.random.split(key)
    state = jax.random.normal(k_state, (B, T, OBS), F32)
    params = make_params(k_params)
    slab = pack_params(params)

    (dist_mean, dist_std), x_emb = plan_recognition_forward(state, slab)
    jax.block_until_ready((dist_mean, dist_std, x_emb))

    assert x_emb.shape == (B, FC)
    assert dist_mean.shape == (B, PLAN)
    assert dist_std.shape == (B, PLAN)
    assert bool(jnp.all(jnp.isfinite(x_emb)))
    assert bool(jnp.all(jnp.isfinite(dist_mean)))
    assert bool(jnp.all(dist_std > 0.0))
    print("KERNEL_OK")
</pallas_src>

<mosaic_0001>
module attributes {stable_mosaic.version = 11 : i64} {
  func.func @plan_recognition_kernel(%arg0: memref<16x16xf32, #tpu.memory_space<vmem>>, %arg1: memref<576x128xbf16, #tpu.memory_space<vmem>>, %arg2: memref<2x48xf32, #tpu.memory_space<vmem>>) attributes {dimension_semantics = [], scalar_prefetch = 0 : i64, scratch_operands = 0 : i64, tpu.core_type = #tpu.core_type<tc>} {
    %c32 = arith.constant 32 : index
    %c0 = arith.constant 0 : index
    %0 = vector.load %arg1[%c32, %c0] : memref<576x128xbf16, #tpu.memory_space<vmem>>, vector<64x32xbf16>
    %c96 = arith.constant 96 : index
    %c0_0 = arith.constant 0 : index
    %1 = vector.load %arg1[%c96, %c0_0] : memref<576x128xbf16, #tpu.memory_space<vmem>>, vector<64x16xbf16>
    %2 = arith.extf %1 : vector<64x16xbf16> to vector<64x16xf32>
    %c544 = arith.constant 544 : index
    %c0_1 = arith.constant 0 : index
    %3 = vector.load %arg1[%c544, %c0_1] : memref<576x128xbf16, #tpu.memory_space<vmem>>, vector<2x16xbf16>
    %c0_2 = arith.constant 0 : index
    %c0_3 = arith.constant 0 : index
    %4 = vector.load %arg0[%c0_2, %c0_3] : memref<16x16xf32, #tpu.memory_space<vmem>>, vector<16x16xf32>
    %5 = arith.truncf %4 : vector<16x16xf32> to vector<16x16xbf16>
    %c16 = arith.constant 16 : index
    %c0_4 = arith.constant 0 : index
    %6 = vector.load %arg1[%c16, %c0_4] : memref<576x128xbf16, #tpu.memory_space<vmem>>, vector<16x32xbf16>
    %cst = arith.constant dense<0.000000e+00> : vector<16x32xf32>
    %7 = tpu.matmul %5, %6, %cst {dimension_numbers = #tpu.dot_dimension_numbers<[1], [0], [0], [1], [0, 0, 1, 1], [], []>} : vector<16x16xbf16>, vector<16x32xbf16>, vector<16x32xf32> -> vector<16x32xf32>
    %c546 = arith.constant 546 : index
    %c0_5 = arith.constant 0 : index
    %8 = vector.load %arg1[%c546, %c0_5] : memref<576x128xbf16, #tpu.memory_space<vmem>>, vector<1x32xbf16>
    %9 = arith.extf %8 : vector<1x32xbf16> to vector<1x32xf32>
    %10 = vector.broadcast %9 : vector<1x32xf32> to vector<16x32xf32>
    %11 = arith.addf %7, %10 : vector<16x32xf32>
    %c0_6 = arith.constant 0 : index
    %c0_7 = arith.constant 0 : index
    %12 = vector.load %arg1[%c0_6, %c0_7] : memref<576x128xbf16, #tpu.memory_space<vmem>>, vector<16x32xbf16>
    %13 = arith.extf %12 : vector<16x32xbf16> to vector<16x32xf32>
    %14 = arith.addf %11, %13 : vector<16x32xf32>
    %c547 = arith.constant 547 : index
    %c0_8 = arith.constant 0 : index
    %15 = vector.load %arg1[%c547, %c0_8] : memref<576x128xbf16, #tpu.memory_space<vmem>>, vector<1x32xbf16>
    %16 = arith.extf %15 : vector<1x32xbf16> to vector<1x32xf32>
    %c548 = arith.constant 548 : index
    %c0_9 = arith.constant 0 : index
    %17 = vector.load %arg1[%c548, %c0_9] : memref<576x128xbf16, #tpu.memory_space<vmem>>, vector<1x32xbf16>
    %18 = arith.extf %17 : vector<1x32xbf16> to vector<1x32xf32>
    %cst_10 = arith.constant dense<0.000000e+00> : vector<16xf32>
    %19 = vector.multi_reduction <add>, %14, %cst_10 [1] : vector<16x32xf32> to vector<16xf32>
    %20 = vector.shape_cast %19 : vector<16xf32> to vector<16x1xf32>
    %cst_11 = arith.constant 3.200000e+01 : f32
    %21 = vector.broadcast %cst_11 : f32 to vector<16x1xf32>
    %22 = arith.divf %20, %21 : vector<16x1xf32>
    %23 = arith.mulf %14, %14 : vector<16x32xf32>
    %cst_12 = arith.constant dense<0.000000e+00> : vector<16xf32>
    %24 = vector.multi_reduction <add>, %23, %cst_12 [1] : vector<16x32xf32> to vector<16xf32>
    %25 = vector.shape_cast %24 : vector<16xf32> to vector<16x1xf32>
    %cst_13 = arith.constant 3.200000e+01 : f32
    %26 = vector.broadcast %cst_13 : f32 to vector<16x1xf32>
    %27 = arith.divf %25, %26 : vector<16x1xf32>
    %28 = arith.mulf %22, %22 : vector<16x1xf32>
    %29 = arith.subf %27, %28 : vector<16x1xf32>
    %cst_14 = arith.constant 0.000000e+00 : f32
    %30 = vector.broadcast %cst_14 : f32 to vector<16x1xf32>
    %31 = arith.maximumf %29, %30 : vector<16x1xf32>
    %32 = vector.broadcast %22 : vector<16x1xf32> to vector<16x32xf32>
    %33 = arith.subf %14, %32 : vector<16x32xf32>
    %cst_15 = arith.constant 9.99999974E-6 : f32
    %34 = vector.broadcast %cst_15 : f32 to vector<16x1xf32>
    %35 = arith.addf %31, %34 : vector<16x1xf32>
    %36 = math.rsqrt %35 : vector<16x1xf32>
    %37 = vector.broadcast %36 : vector<16x1xf32> to vector<16x32xf32>
    %38 = arith.mulf %33, %37 : vector<16x32xf32>
    %39 = vector.broadcast %16 : vector<1x32xf32> to vector<16x32xf32>
    %40 = arith.mulf %38, %39 : vector<16x32xf32>
    %41 = vector.broadcast %18 : vector<1x32xf32> to vector<16x32xf32>
    %42 = arith.addf %40, %41 : vector<16x32xf32>
    %43 = arith.truncf %42 : vector<16x32xf32> to vector<16x32xbf16>
    %c160 = arith.constant 160 : index
    %c0_16 = arith.constant 0 : index
    %44 = vector.load %arg1[%c160, %c0_16] : memref<576x128xbf16, #tpu.memory_space<vmem>>, vector<32x96xbf16>
    %cst_17 = arith.constant dense<0.000000e+00> : vector<16x96xf32>
    %45 = tpu.matmul %43, %44, %cst_17 {dimension_numbers = #tpu.dot_dimension_numbers<[1], [0], [0], [1], [0, 0, 1, 1], [], []>} : vector<16x32xbf16>, vector<32x96xbf16>, vector<16x96xf32> -> vector<16x96xf32>
    %c549 = arith.constant 549 : index
    %c0_18 = arith.constant 0 : index
    %46 = vector.load %arg1[%c549, %c0_18] : memref<576x128xbf16, #tpu.memory_space<vmem>>, vector<1x96xbf16>
    %47 = arith.extf %46 : vector<1x96xbf16> to vector<1x96xf32>
    %48 = vector.broadcast %47 : vector<1x96xf32> to vector<16x96xf32>
    %49 = arith.addf %45, %48 : vector<16x96xf32>
    %50 = vector.extract_strided_slice %49 {offsets = [0, 0], sizes = [16, 32], strides = [1, 1]} : vector<16x96xf32> to vector<16x32xf32>
    %51 = arith.truncf %50 : vector<16x32xf32> to vector<16x32xbf16>
    %52 = vector.extract_strided_slice %49 {offsets = [0, 32], sizes = [16, 32], strides = [1, 1]} : vector<16x96xf32> to vector<16x32xf32>
    %53 = arith.truncf %52 : vector<16x32xf32> to vector<16x32xbf16>
    %54 = vector.extract_strided_slice %49 {offsets = [0, 64], sizes = [16, 32], strides = [1, 1]} : vector<16x96xf32> to vector<16x32xf32>
    %55 = arith.truncf %54 : vector<16x32xf32> to vector<16x32xbf16>
    %56 = tpu.concatenate %51, %51, %51, %51 in 0 : vector<16x32xbf16>, vector<16x32xbf16>, vector<16x32xbf16>, vector<16x32xbf16> -> vector<64x32xbf16>
    %57 = arith.mulf %56, %0 : vector<64x32xbf16>
    %cst_19 = arith.constant dense<0.000000e+00> : vector<64x16xf32>
    %58 = tpu.matmul %57, %53, %cst_19 {dimension_numbers = #tpu.dot_dimension_numbers<[1], [1], [0], [0], [0, 0, 1, 0], [], []>} : vector<64x32xbf16>, vector<16x32xbf16>, vector<64x16xf32> -> vector<64x16xf32>
    %59 = arith.addf %58, %2 : vector<64x16xf32>
    %cst_20 = arith.constant dense<0xFF800000> : vector<64xf32>
    %60 = vector.multi_reduction <maximumf>, %59, %cst_20 [1] : vector<64x16xf32> to vector<64xf32>
    %61 = vector.shape_cast %60 : vector<64xf32> to vector<64x1xf32>
    %62 = vector.broadcast %61 : vector<64x1xf32> to vector<64x16xf32>
    %63 = arith.subf %59, %62 : vector<64x16xf32>
    %64 = math.exp %63 : vector<64x16xf32>
    %cst_21 = arith.constant dense<0.000000e+00> : vector<64xf32>
    %65 = vector.multi_reduction <add>, %64, %cst_21 [1] : vector<64x16xf32> to vector<64xf32>
    %66 = vector.shape_cast %65 : vector<64xf32> to vector<64x1xf32>
    %67 = tpu.reciprocal %66 {approx = true} : vector<64x1xf32> -> vector<64x1xf32>
    %68 = vector.broadcast %67 : vector<64x1xf32> to vector<64x16xf32>
    %69 = arith.mulf %64, %68 : vector<64x16xf32>
    %70 = arith.truncf %69 : vector<64x16xf32> to vector<64x16xbf16>
    %cst_22 = arith.constant dense<0.000000e+00> : vector<64x32xf32>
    %71 = tpu.matmul %70, %55, %cst_22 {dimension_numbers = #tpu.dot_dimension_numbers<[1], [0], [0], [1], [0, 0, 1, 1], [], []>} : vector<64x16xbf16>, vector<16x32xbf16>, vector<64x32xf32> -> vector<64x32xf32>
    %72 = arith.truncf %71 : vector<64x32xf32> to vector<64x32xbf16>
    %73 = arith.mulf %72, %0 : vector<64x32xbf16>
    %74 = vector.extract_strided_slice %73 {offsets = [0, 0], sizes = [16, 32], strides = [1, 1]} : vector<64x32xbf16> to vector<16x32xbf16>
    %75 = vector.extract_strided_slice %73 {offsets = [16, 0], sizes = [16, 32], strides = [1, 1]} : vector<64x32xbf16> to vector<16x32xbf16>
    %76 = arith.addf %74, %75 : vector<16x32xbf16>
    %77 = vector.extract_strided_slice %73 {offsets = [32, 0], sizes = [16, 32], strides = [1, 1]} : vector<64x32xbf16> to vector<16x32xbf16>
    %78 = arith.addf %76, %77 : vector<16x32xbf16>
    %79 = vector.extract_strided_slice %73 {offsets = [48, 0], sizes = [16, 32], strides = [1, 1]} : vector<64x32xbf16> to vector<16x32xbf16>
    %80 = arith.addf %78, %79 : vector<16x32xbf16>
    %c192 = arith.constant 192 : index
    %c0_23 = arith.constant 0 : index
    %81 = vector.load %arg1[%c192, %c0_23] : memref<576x128xbf16, #tpu.memory_space<vmem>>, vector<32x32xbf16>
    %cst_24 = arith.constant dense<0.000000e+00> : vector<16x32xf32>
    %82 = tpu.matmul %80, %81, %cst_24 {dimension_numbers = #tpu.dot_dimension_numbers<[1], [0], [0], [1], [0, 0, 1, 1], [], []>} : vector<16x32xbf16>, vector<32x32xbf16>, vector<16x32xf32> -> vector<16x32xf32>
    %c550 = arith.constant 550 : index
    %c0_25 = arith.constant 0 : index
    %83 = vector.load %arg1[%c550, %c0_25] : memref<576x128xbf16, #tpu.memory_space<vmem>>, vector<1x32xbf16>
    %84 = arith.extf %83 : vector<1x32xbf16> to vector<1x32xf32>
    %85 = vector.broadcast %84 : vector<1x32xf32> to vector<16x32xf32>
    %86 = arith.addf %82, %85 : vector<16x32xf32>
    %87 = arith.addf %42, %86 : vector<16x32xf32>
    %c551 = arith.constant 551 : index
    %c0_26 = arith.constant 0 : index
    %88 = vector.load %arg1[%c551, %c0_26] : memref<576x128xbf16, #tpu.memory_space<vmem>>, vector<1x32xbf16>
    %89 = arith.extf %88 : vector<1x32xbf16> to vector<1x32xf32>
    %c552 = arith.constant 552 : index
    %c0_27 = arith.constant 0 : index
    %90 = vector.load %arg1[%c552, %c0_27] : memref<576x128xbf16, #tpu.memory_space<vmem>>, vector<1x32xbf16>
    %91 = arith.extf %90 : vector<1x32xbf16> to vector<1x32xf32>
    %cst_28 = arith.constant dense<0.000000e+00> : vector<16xf32>
    %92 = vector.multi_reduction <add>, %87, %cst_28 [1] : vector<16x32xf32> to vector<16xf32>
    %93 = vector.shape_cast %92 : vector<16xf32> to vector<16x1xf32>
    %cst_29 = arith.constant 3.200000e+01 : f32
    %94 = vector.broadcast %cst_29 : f32 to vector<16x1xf32>
    %95 = arith.divf %93, %94 : vector<16x1xf32>
    %96 = arith.mulf %87, %87 : vector<16x32xf32>
    %cst_30 = arith.constant dense<0.000000e+00> : vector<16xf32>
    %97 = vector.multi_reduction <add>, %96, %cst_30 [1] : vector<16x32xf32> to vector<16xf32>
    %98 = vector.shape_cast %97 : vector<16xf32> to vector<16x1xf32>
    %cst_31 = arith.constant 3.200000e+01 : f32
    %99 = vector.broadcast %cst_31 : f32 to vector<16x1xf32>
    %100 = arith.divf %98, %99 : vector<16x1xf32>
    %101 = arith.mulf %95, %95 : vector<16x1xf32>
    %102 = arith.subf %100, %101 : vector<16x1xf32>
    %cst_32 = arith.constant 0.000000e+00 : f32
    %103 = vector.broadcast %cst_32 : f32 to vector<16x1xf32>
    %104 = arith.maximumf %102, %103 : vector<16x1xf32>
    %105 = vector.broadcast %95 : vector<16x1xf32> to vector<16x32xf32>
    %106 = arith.subf %87, %105 : vector<16x32xf32>
    %cst_33 = arith.constant 9.99999974E-6 : f32
    %107 = vector.broadcast %cst_33 : f32 to vector<16x1xf32>
    %108 = arith.addf %104, %107 : vector<16x1xf32>
    %109 = math.rsqrt %108 : vector<16x1xf32>
    %110 = vector.broadcast %109 : vector<16x1xf32> to vector<16x32xf32>
    %111 = arith.mulf %106, %110 : vector<16x32xf32>
    %112 = vector.broadcast %89 : vector<1x32xf32> to vector<16x32xf32>
    %113 = arith.mulf %111, %112 : vector<16x32xf32>
    %114 = vector.broadcast %91 : vector<1x32xf32> to vector<16x32xf32>
    %115 = arith.addf %113, %114 : vector<16x32xf32>
    %116 = arith.truncf %115 : vector<16x32xf32> to vector<16x32xbf16>
    %c224 = arith.constant 224 : index
    %c0_34 = arith.constant 0 : index
    %117 = vector.load %arg1[%c224, %c0_34] : memref<576x128xbf16, #tpu.memory_space<vmem>>, vector<32x64xbf16>
    %cst_35 = arith.constant dense<0.000000e+00> : vector<16x64xf32>
    %118 = tpu.matmul %116, %117, %cst_35 {dimension_numbers = #tpu.dot_dimension_numbers<[1], [0], [0], [1], [0, 0, 1, 1], [], []>} : vector<16x32xbf16>, vector<32x64xbf16>, vector<16x64xf32> -> vector<16x64xf32>
    %c553 = arith.constant 553 : index
    %c0_36 = arith.constant 0 : index
    %119 = vector.load %arg1[%c553, %c0_36] : memref<576x128xbf16, #tpu.memory_space<vmem>>, vector<1x64xbf16>
    %120 = arith.extf %119 : vector<1x64xbf16> to vector<1x64xf32>
    %121 = vector.broadcast %120 : vector<1x64xf32> to vector<16x64xf32>
    %122 = arith.addf %118, %121 : vector<16x64xf32>
    %cst_37 = arith.constant 0.000000e+00 : f32
    %123 = vector.broadcast %cst_37 : f32 to vector<16x64xf32>
    %124 = arith.maximumf %122, %123 : vector<16x64xf32>
    %125 = arith.truncf %124 : vector<16x64xf32> to vector<16x64xbf16>
    %c256 = arith.constant 256 : index
    %c0_38 = arith.constant 0 : index
    %126 = vector.load %arg1[%c256, %c0_38] : memref<576x128xbf16, #tpu.memory_space<vmem>>, vector<64x32xbf16>
    %cst_39 = arith.constant dense<0.000000e+00> : vector<16x32xf32>
    %127 = tpu.matmul %125, %126, %cst_39 {dimension_numbers = #tpu.dot_dimension_numbers<[1], [0], [0], [1], [0, 0, 1, 1], [], []>} : vector<16x64xbf16>, vector<64x32xbf16>, vector<16x32xf32> -> vector<16x32xf32>
    %c554 = arith.constant 554 : index
    %c0_40 = arith.constant 0 : index
    %128 = vector.load %arg1[%c554, %c0_40] : memref<576x128xbf16, #tpu.memory_space<vmem>>, vector<1x32xbf16>
    %129 = arith.extf %128 : vector<1x32xbf16> to vector<1x32xf32>
    %130 = vector.broadcast %129 : vector<1x32xf32> to vector<16x32xf32>
    %131 = arith.addf %127, %130 : vector<16x32xf32>
    %132 = arith.addf %115, %131 : vector<16x32xf32>
    %c555 = arith.constant 555 : index
    %c0_41 = arith.constant 0 : index
    %133 = vector.load %arg1[%c555, %c0_41] : memref<576x128xbf16, #tpu.memory_space<vmem>>, vector<1x32xbf16>
    %134 = arith.extf %133 : vector<1x32xbf16> to vector<1x32xf32>
    %c556 = arith.constant 556 : index
    %c0_42 = arith.constant 0 : index
    %135 = vector.load %arg1[%c556, %c0_42] : memref<576x128xbf16, #tpu.memory_space<vmem>>, vector<1x32xbf16>
    %136 = arith.extf %135 : vector<1x32xbf16> to vector<1x32xf32>
    %cst_43 = arith.constant dense<0.000000e+00> : vector<16xf32>
    %137 = vector.multi_reduction <add>, %132, %cst_43 [1] : vector<16x32xf32> to vector<16xf32>
    %138 = vector.shape_cast %137 : vector<16xf32> to vector<16x1xf32>
    %cst_44 = arith.constant 3.200000e+01 : f32
    %139 = vector.broadcast %cst_44 : f32 to vector<16x1xf32>
    %140 = arith.divf %138, %139 : vector<16x1xf32>
    %141 = arith.mulf %132, %132 : vector<16x32xf32>
    %cst_45 = arith.constant dense<0.000000e+00> : vector<16xf32>
    %142 = vector.multi_reduction <add>, %141, %cst_45 [1] : vector<16x32xf32> to vector<16xf32>
    %143 = vector.shape_cast %142 : vector<16xf32> to vector<16x1xf32>
    %cst_46 = arith.constant 3.200000e+01 : f32
    %144 = vector.broadcast %cst_46 : f32 to vector<16x1xf32>
    %145 = arith.divf %143, %144 : vector<16x1xf32>
    %146 = arith.mulf %140, %140 : vector<16x1xf32>
    %147 = arith.subf %145, %146 : vector<16x1xf32>
    %cst_47 = arith.constant 0.000000e+00 : f32
    %148 = vector.broadcast %cst_47 : f32 to vector<16x1xf32>
    %149 = arith.maximumf %147, %148 : vector<16x1xf32>
    %150 = vector.broadcast %140 : vector<16x1xf32> to vector<16x32xf32>
    %151 = arith.subf %132, %150 : vector<16x32xf32>
    %cst_48 = arith.constant 9.99999974E-6 : f32
    %152 = vector.broadcast %cst_48 : f32 to vector<16x1xf32>
    %153 = arith.addf %149, %152 : vector<16x1xf32>
    %154 = math.rsqrt %153 : vector<16x1xf32>
    %155 = vector.broadcast %154 : vector<16x1xf32> to vector<16x32xf32>
    %156 = arith.mulf %151, %155 : vector<16x32xf32>
    %157 = vector.broadcast %134 : vector<1x32xf32> to vector<16x32xf32>
    %158 = arith.mulf %156, %157 : vector<16x32xf32>
    %159 = vector.broadcast %136 : vector<1x32xf32> to vector<16x32xf32>
    %160 = arith.addf %158, %159 : vector<16x32xf32>
    %161 = arith.truncf %160 : vector<16x32xf32> to vector<16x32xbf16>
    %c320 = arith.constant 320 : index
    %c0_49 = arith.constant 0 : index
    %162 = vector.load %arg1[%c320, %c0_49] : memref<576x128xbf16, #tpu.memory_space<vmem>>, vector<32x96xbf16>
    %cst_50 = arith.constant dense<0.000000e+00> : vector<16x96xf32>
    %163 = tpu.matmul %161, %162, %cst_50 {dimension_numbers = #tpu.dot_dimension_numbers<[1], [0], [0], [1], [0, 0, 1, 1], [], []>} : vector<16x32xbf16>, vector<32x96xbf16>, vector<16x96xf32> -> vector<16x96xf32>
    %c557 = arith.constant 557 : index
    %c0_51 = arith.constant 0 : index
    %164 = vector.load %arg1[%c557, %c0_51] : memref<576x128xbf16, #tpu.memory_space<vmem>>, vector<1x96xbf16>
    %165 = arith.extf %164 : vector<1x96xbf16> to vector<1x96xf32>
    %166 = vector.broadcast %165 : vector<1x96xf32> to vector<16x96xf32>
    %167 = arith.addf %163, %166 : vector<16x96xf32>
    %168 = vector.extract_strided_slice %167 {offsets = [0, 0], sizes = [16, 32], strides = [1, 1]} : vector<16x96xf32> to vector<16x32xf32>
    %169 = arith.truncf %168 : vector<16x32xf32> to vector<16x32xbf16>
    %170 = vector.extract_strided_slice %167 {offsets = [0, 32], sizes = [16, 32], strides = [1, 1]} : vector<16x96xf32> to vector<16x32xf32>
    %171 = arith.truncf %170 : vector<16x32xf32> to vector<16x32xbf16>
    %172 = vector.extract_strided_slice %167 {offsets = [0, 64], sizes = [16, 32], strides = [1, 1]} : vector<16x96xf32> to vector<16x32xf32>
    %173 = arith.truncf %172 : vector<16x32xf32> to vector<16x32xbf16>
    %174 = tpu.concatenate %169, %169, %169, %169 in 0 : vector<16x32xbf16>, vector<16x32xbf16>, vector<16x32xbf16>, vector<16x32xbf16> -> vector<64x32xbf16>
    %175 = arith.mulf %174, %0 : vector<64x32xbf16>
    %cst_52 = arith.constant dense<0.000000e+00> : vector<64x16xf32>
    %176 = tpu.matmul %175, %171, %cst_52 {dimension_numbers = #tpu.dot_dimension_numbers<[1], [1], [0], [0], [0, 0, 1, 0], [], []>} : vector<64x32xbf16>, vector<16x32xbf16>, vector<64x16xf32> -> vector<64x16xf32>
    %177 = arith.addf %176, %2 : vector<64x16xf32>
    %cst_53 = arith.constant dense<0xFF800000> : vector<64xf32>
    %178 = vector.multi_reduction <maximumf>, %177, %cst_53 [1] : vector<64x16xf32> to vector<64xf32>
    %179 = vector.shape_cast %178 : vector<64xf32> to vector<64x1xf32>
    %180 = vector.broadcast %179 : vector<64x1xf32> to vector<64x16xf32>
    %181 = arith.subf %177, %180 : vector<64x16xf32>
    %182 = math.exp %181 : vector<64x16xf32>
    %cst_54 = arith.constant dense<0.000000e+00> : vector<64xf32>
    %183 = vector.multi_reduction <add>, %182, %cst_54 [1] : vector<64x16xf32> to vector<64xf32>
    %184 = vector.shape_cast %183 : vector<64xf32> to vector<64x1xf32>
    %185 = tpu.reciprocal %184 {approx = true} : vector<64x1xf32> -> vector<64x1xf32>
    %186 = vector.broadcast %185 : vector<64x1xf32> to vector<64x16xf32>
    %187 = arith.mulf %182, %186 : vector<64x16xf32>
    %188 = arith.truncf %187 : vector<64x16xf32> to vector<64x16xbf16>
    %cst_55 = arith.constant dense<0.000000e+00> : vector<64x32xf32>
    %189 = tpu.matmul %188, %173, %cst_55 {dimension_numbers = #tpu.dot_dimension_numbers<[1], [0], [0], [1], [0, 0, 1, 1], [], []>} : vector<64x16xbf16>, vector<16x32xbf16>, vector<64x32xf32> -> vector<64x32xf32>
    %190 = arith.truncf %189 : vector<64x32xf32> to vector<64x32xbf16>
    %191 = arith.mulf %190, %0 : vector<64x32xbf16>
    %192 = vector.extract_strided_slice %191 {offsets = [0, 0], sizes = [16, 32], strides = [1, 1]} : vector<64x32xbf16> to vector<16x32xbf16>
    %193 = vector.extract_strided_slice %191 {offsets = [16, 0], sizes = [16, 32], strides = [1, 1]} : vector<64x32xbf16> to vector<16x32xbf16>
    %194 = arith.addf %192, %193 : vector<16x32xbf16>
    %195 = vector.extract_strided_slice %191 {offsets = [32, 0], sizes = [16, 32], strides = [1, 1]} : vector<64x32xbf16> to vector<16x32xbf16>
    %196 = arith.addf %194, %195 : vector<16x32xbf16>
    %197 = vector.extract_strided_slice %191 {offsets = [48, 0], sizes = [16, 32], strides = [1, 1]} : vector<64x32xbf16> to vector<16x32xbf16>
    %198 = arith.addf %196, %197 : vector<16x32xbf16>
    %c352 = arith.constant 352 : index
    %c0_56 = arith.constant 0 : index
    %199 = vector.load %arg1[%c352, %c0_56] : memref<576x128xbf16, #tpu.memory_space<vmem>>, vector<32x32xbf16>
    %cst_57 = arith.constant dense<0.000000e+00> : vector<16x32xf32>
    %200 = tpu.matmul %198, %199, %cst_57 {dimension_numbers = #tpu.dot_dimension_numbers<[1], [0], [0], [1], [0, 0, 1, 1], [], []>} : vector<16x32xbf16>, vector<32x32xbf16>, vector<16x32xf32> -> vector<16x32xf32>
    %c558 = arith.constant 558 : index
    %c0_58 = arith.constant 0 : index
    %201 = vector.load %arg1[%c558, %c0_58] : memref<576x128xbf16, #tpu.memory_space<vmem>>, vector<1x32xbf16>
    %202 = arith.extf %201 : vector<1x32xbf16> to vector<1x32xf32>
    %203 = vector.broadcast %202 : vector<1x32xf32> to vector<16x32xf32>
    %204 = arith.addf %200, %203 : vector<16x32xf32>
    %205 = arith.addf %160, %204 : vector<16x32xf32>
    %c559 = arith.constant 559 : index
    %c0_59 = arith.constant 0 : index
    %206 = vector.load %arg1[%c559, %c0_59] : memref<576x128xbf16, #tpu.memory_space<vmem>>, vector<1x32xbf16>
    %207 = arith.extf %206 : vector<1x32xbf16> to vector<1x32xf32>
    %c560 = arith.constant 560 : index
    %c0_60 = arith.constant 0 : index
    %208 = vector.load %arg1[%c560, %c0_60] : memref<576x128xbf16, #tpu.memory_space<vmem>>, vector<1x32xbf16>
    %209 = arith.extf %208 : vector<1x32xbf16> to vector<1x32xf32>
    %cst_61 = arith.constant dense<0.000000e+00> : vector<16xf32>
    %210 = vector.multi_reduction <add>, %205, %cst_61 [1] : vector<16x32xf32> to vector<16xf32>
    %211 = vector.shape_cast %210 : vector<16xf32> to vector<16x1xf32>
    %cst_62 = arith.constant 3.200000e+01 : f32
    %212 = vector.broadcast %cst_62 : f32 to vector<16x1xf32>
    %213 = arith.divf %211, %212 : vector<16x1xf32>
    %214 = arith.mulf %205, %205 : vector<16x32xf32>
    %cst_63 = arith.constant dense<0.000000e+00> : vector<16xf32>
    %215 = vector.multi_reduction <add>, %214, %cst_63 [1] : vector<16x32xf32> to vector<16xf32>
    %216 = vector.shape_cast %215 : vector<16xf32> to vector<16x1xf32>
    %cst_64 = arith.constant 3.200000e+01 : f32
    %217 = vector.broadcast %cst_64 : f32 to vector<16x1xf32>
    %218 = arith.divf %216, %217 : vector<16x1xf32>
    %219 = arith.mulf %213, %213 : vector<16x1xf32>
    %220 = arith.subf %218, %219 : vector<16x1xf32>
    %cst_65 = arith.constant 0.000000e+00 : f32
    %221 = vector.broadcast %cst_65 : f32 to vector<16x1xf32>
    %222 = arith.maximumf %220, %221 : vector<16x1xf32>
    %223 = vector.broadcast %213 : vector<16x1xf32> to vector<16x32xf32>
    %224 = arith.subf %205, %223 : vector<16x32xf32>
    %cst_66 = arith.constant 9.99999974E-6 : f32
    %225 = vector.broadcast %cst_66 : f32 to vector<16x1xf32>
    %226 = arith.addf %222, %225 : vector<16x1xf32>
    %227 = math.rsqrt %226 : vector<16x1xf32>
    %228 = vector.broadcast %227 : vector<16x1xf32> to vector<16x32xf32>
    %229 = arith.mulf %224, %228 : vector<16x32xf32>
    %230 = vector.broadcast %207 : vector<1x32xf32> to vector<16x32xf32>
    %231 = arith.mulf %229, %230 : vector<16x32xf32>
    %232 = vector.broadcast %209 : vector<1x32xf32> to vector<16x32xf32>
    %233 = arith.addf %231, %232 : vector<16x32xf32>
    %234 = arith.truncf %233 : vector<16x32xf32> to vector<16x32xbf16>
    %c384 = arith.constant 384 : index
    %c0_67 = arith.constant 0 : index
    %235 = vector.load %arg1[%c384, %c0_67] : memref<576x128xbf16, #tpu.memory_space<vmem>>, vector<32x64xbf16>
    %cst_68 = arith.constant dense<0.000000e+00> : vector<16x64xf32>
    %236 = tpu.matmul %234, %235, %cst_68 {dimension_numbers = #tpu.dot_dimension_numbers<[1], [0], [0], [1], [0, 0, 1, 1], [], []>} : vector<16x32xbf16>, vector<32x64xbf16>, vector<16x64xf32> -> vector<16x64xf32>
    %c561 = arith.constant 561 : index
    %c0_69 = arith.constant 0 : index
    %237 = vector.load %arg1[%c561, %c0_69] : memref<576x128xbf16, #tpu.memory_space<vmem>>, vector<1x64xbf16>
    %238 = arith.extf %237 : vector<1x64xbf16> to vector<1x64xf32>
    %239 = vector.broadcast %238 : vector<1x64xf32> to vector<16x64xf32>
    %240 = arith.addf %236, %239 : vector<16x64xf32>
    %cst_70 = arith.constant 0.000000e+00 : f32
    %241 = vector.broadcast %cst_70 : f32 to vector<16x64xf32>
    %242 = arith.maximumf %240, %241 : vector<16x64xf32>
    %243 = arith.truncf %242 : vector<16x64xf32> to vector<16x64xbf16>
    %c416 = arith.constant 416 : index
    %c0_71 = arith.constant 0 : index
    %244 = vector.load %arg1[%c416, %c0_71] : memref<576x128xbf16, #tpu.memory_space<vmem>>, vector<64x32xbf16>
    %cst_72 = arith.constant dense<0.000000e+00> : vector<16x32xf32>
    %245 = tpu.matmul %243, %244, %cst_72 {dimension_numbers = #tpu.dot_dimension_numbers<[1], [0], [0], [1], [0, 0, 1, 1], [], []>} : vector<16x64xbf16>, vector<64x32xbf16>, vector<16x32xf32> -> vector<16x32xf32>
    %c562 = arith.constant 562 : index
    %c0_73 = arith.constant 0 : index
    %246 = vector.load %arg1[%c562, %c0_73] : memref<576x128xbf16, #tpu.memory_space<vmem>>, vector<1x32xbf16>
    %247 = arith.extf %246 : vector<1x32xbf16> to vector<1x32xf32>
    %248 = vector.broadcast %247 : vector<1x32xf32> to vector<16x32xf32>
    %249 = arith.addf %245, %248 : vector<16x32xf32>
    %250 = arith.addf %233, %249 : vector<16x32xf32>
    %c563 = arith.constant 563 : index
    %c0_74 = arith.constant 0 : index
    %251 = vector.load %arg1[%c563, %c0_74] : memref<576x128xbf16, #tpu.memory_space<vmem>>, vector<1x32xbf16>
    %252 = arith.extf %251 : vector<1x32xbf16> to vector<1x32xf32>
    %c564 = arith.constant 564 : index
    %c0_75 = arith.constant 0 : index
    %253 = vector.load %arg1[%c564, %c0_75] : memref<576x128xbf16, #tpu.memory_space<vmem>>, vector<1x32xbf16>
    %254 = arith.extf %253 : vector<1x32xbf16> to vector<1x32xf32>
    %cst_76 = arith.constant dense<0.000000e+00> : vector<16xf32>
    %255 = vector.multi_reduction <add>, %250, %cst_76 [1] : vector<16x32xf32> to vector<16xf32>
    %256 = vector.shape_cast %255 : vector<16xf32> to vector<16x1xf32>
    %cst_77 = arith.constant 3.200000e+01 : f32
    %257 = vector.broadcast %cst_77 : f32 to vector<16x1xf32>
    %258 = arith.divf %256, %257 : vector<16x1xf32>
    %259 = arith.mulf %250, %250 : vector<16x32xf32>
    %cst_78 = arith.constant dense<0.000000e+00> : vector<16xf32>
    %260 = vector.multi_reduction <add>, %259, %cst_78 [1] : vector<16x32xf32> to vector<16xf32>
    %261 = vector.shape_cast %260 : vector<16xf32> to vector<16x1xf32>
    %cst_79 = arith.constant 3.200000e+01 : f32
    %262 = vector.broadcast %cst_79 : f32 to vector<16x1xf32>
    %263 = arith.divf %261, %262 : vector<16x1xf32>
    %264 = arith.mulf %258, %258 : vector<16x1xf32>
    %265 = arith.subf %263, %264 : vector<16x1xf32>
    %cst_80 = arith.constant 0.000000e+00 : f32
    %266 = vector.broadcast %cst_80 : f32 to vector<16x1xf32>
    %267 = arith.maximumf %265, %266 : vector<16x1xf32>
    %268 = vector.broadcast %258 : vector<16x1xf32> to vector<16x32xf32>
    %269 = arith.subf %250, %268 : vector<16x32xf32>
    %cst_81 = arith.constant 9.99999974E-6 : f32
    %270 = vector.broadcast %cst_81 : f32 to vector<16x1xf32>
    %271 = arith.addf %267, %270 : vector<16x1xf32>
    %272 = math.rsqrt %271 : vector<16x1xf32>
    %273 = vector.broadcast %272 : vector<16x1xf32> to vector<16x32xf32>
    %274 = arith.mulf %269, %273 : vector<16x32xf32>
    %275 = vector.broadcast %252 : vector<1x32xf32> to vector<16x32xf32>
    %276 = arith.mulf %274, %275 : vector<16x32xf32>
    %277 = vector.broadcast %254 : vector<1x32xf32> to vector<16x32xf32>
    %278 = arith.addf %276, %277 : vector<16x32xf32>
    %c565 = arith.constant 565 : index
    %c0_82 = arith.constant 0 : index
    %279 = vector.load %arg1[%c565, %c0_82] : memref<576x128xbf16, #tpu.memory_space<vmem>>, vector<1x32xbf16>
    %280 = arith.extf %279 : vector<1x32xbf16> to vector<1x32xf32>
    %c566 = arith.constant 566 : index
    %c0_83 = arith.constant 0 : index
    %281 = vector.load %arg1[%c566, %c0_83] : memref<576x128xbf16, #tpu.memory_space<vmem>>, vector<1x32xbf16>
    %282 = arith.extf %281 : vector<1x32xbf16> to vector<1x32xf32>
    %cst_84 = arith.constant dense<0.000000e+00> : vector<16xf32>
    %283 = vector.multi_reduction <add>, %278, %cst_84 [1] : vector<16x32xf32> to vector<16xf32>
    %284 = vector.shape_cast %283 : vector<16xf32> to vector<16x1xf32>
    %cst_85 = arith.constant 3.200000e+01 : f32
    %285 = vector.broadcast %cst_85 : f32 to vector<16x1xf32>
    %286 = arith.divf %284, %285 : vector<16x1xf32>
    %287 = arith.mulf %278, %278 : vector<16x32xf32>
    %cst_86 = arith.constant dense<0.000000e+00> : vector<16xf32>
    %288 = vector.multi_reduction <add>, %287, %cst_86 [1] : vector<16x32xf32> to vector<16xf32>
    %289 = vector.shape_cast %288 : vector<16xf32> to vector<16x1xf32>
    %cst_87 = arith.constant 3.200000e+01 : f32
    %290 = vector.broadcast %cst_87 : f32 to vector<16x1xf32>
    %291 = arith.divf %289, %290 : vector<16x1xf32>
    %292 = arith.mulf %286, %286 : vector<16x1xf32>
    %293 = arith.subf %291, %292 : vector<16x1xf32>
    %cst_88 = arith.constant 0.000000e+00 : f32
    %294 = vector.broadcast %cst_88 : f32 to vector<16x1xf32>
    %295 = arith.maximumf %293, %294 : vector<16x1xf32>
    %296 = vector.broadcast %286 : vector<16x1xf32> to vector<16x32xf32>
    %297 = arith.subf %278, %296 : vector<16x32xf32>
    %cst_89 = arith.constant 9.99999974E-6 : f32
    %298 = vector.broadcast %cst_89 : f32 to vector<16x1xf32>
    %299 = arith.addf %295, %298 : vector<16x1xf32>
    %300 = math.rsqrt %299 : vector<16x1xf32>
    %301 = vector.broadcast %300 : vector<16x1xf32> to vector<16x32xf32>
    %302 = arith.mulf %297, %301 : vector<16x32xf32>
    %303 = vector.broadcast %280 : vector<1x32xf32> to vector<16x32xf32>
    %304 = arith.mulf %302, %303 : vector<16x32xf32>
    %305 = vector.broadcast %282 : vector<1x32xf32> to vector<16x32xf32>
    %306 = arith.addf %304, %305 : vector<16x32xf32>
    %307 = arith.truncf %306 : vector<16x32xf32> to vector<16x32xbf16>
    %cst_90 = arith.constant dense<0.000000e+00> : vector<2x32xf32>
    %308 = tpu.matmul %3, %307, %cst_90 {dimension_numbers = #tpu.dot_dimension_numbers<[1], [0], [0], [1], [0, 0, 1, 1], [], []>} : vector<2x16xbf16>, vector<16x32xbf16>, vector<2x32xf32> -> vector<2x32xf32>
    %309 = arith.truncf %308 : vector<2x32xf32> to vector<2x32xbf16>
    %c480 = arith.constant 480 : index
    %c0_91 = arith.constant 0 : index
    %310 = vector.load %arg1[%c480, %c0_91] : memref<576x128xbf16, #tpu.memory_space<vmem>>, vector<32x32xbf16>
    %cst_92 = arith.constant dense<0.000000e+00> : vector<2x32xf32>
    %311 = tpu.matmul %309, %310, %cst_92 {dimension_numbers = #tpu.dot_dimension_numbers<[1], [0], [0], [1], [0, 0, 1, 1], [], []>} : vector<2x32xbf16>, vector<32x32xbf16>, vector<2x32xf32> -> vector<2x32xf32>
    %c567 = arith.constant 567 : index
    %c0_93 = arith.constant 0 : index
    %312 = vector.load %arg1[%c567, %c0_93] : memref<576x128xbf16, #tpu.memory_space<vmem>>, vector<1x32xbf16>
    %313 = arith.extf %312 : vector<1x32xbf16> to vector<1x32xf32>
    %314 = vector.broadcast %313 : vector<1x32xf32> to vector<2x32xf32>
    %315 = arith.addf %311, %314 : vector<2x32xf32>
    %316 = arith.truncf %315 : vector<2x32xf32> to vector<2x32xbf16>
    %c512 = arith.constant 512 : index
    %c0_94 = arith.constant 0 : index
    %317 = vector.load %arg1[%c512, %c0_94] : memref<576x128xbf16, #tpu.memory_space<vmem>>, vector<32x16xbf16>
    %cst_95 = arith.constant dense<0.000000e+00> : vector<2x16xf32>
    %318 = tpu.matmul %316, %317, %cst_95 {dimension_numbers = #tpu.dot_dimension_numbers<[1], [0], [0], [1], [0, 0, 1, 1], [], []>} : vector<2x32xbf16>, vector<32x16xbf16>, vector<2x16xf32> -> vector<2x16xf32>
    %c568 = arith.constant 568 : index
    %c0_96 = arith.constant 0 : index
    %319 = vector.load %arg1[%c568, %c0_96] : memref<576x128xbf16, #tpu.memory_space<vmem>>, vector<1x16xbf16>
    %320 = arith.extf %319 : vector<1x16xbf16> to vector<1x16xf32>
    %321 = vector.broadcast %320 : vector<1x16xf32> to vector<2x16xf32>
    %322 = arith.addf %318, %321 : vector<2x16xf32>
    %323 = vector.extract_strided_slice %322 {offsets = [0, 0], sizes = [2, 8], strides = [1, 1]} : vector<2x16xf32> to vector<2x8xf32>
    %324 = vector.extract_strided_slice %322 {offsets = [0, 8], sizes = [2, 8], strides = [1, 1]} : vector<2x16xf32> to vector<2x8xf32>
    %cst_97 = arith.constant 0.000000e+00 : f32
    %325 = vector.broadcast %cst_97 : f32 to vector<2x8xf32>
    %326 = arith.maximumf %324, %325 : vector<2x8xf32>
    %327 = math.absf %324 : vector<2x8xf32>
    %cst_98 = arith.constant 0.000000e+00 : f32
    %328 = vector.broadcast %cst_98 : f32 to vector<2x8xf32>
    %329 = arith.subf %328, %327 : vector<2x8xf32>
    %330 = math.exp %329 : vector<2x8xf32>
    %331 = math.log1p %330 : vector<2x8xf32>
    %332 = arith.addf %326, %331 : vector<2x8xf32>
    %cst_99 = arith.constant 9.99999974E-5 : f32
    %333 = vector.broadcast %cst_99 : f32 to vector<2x8xf32>
    %334 = arith.addf %332, %333 : vector<2x8xf32>
    %335 = tpu.concatenate %315, %323, %334 in 1 : vector<2x32xf32>, vector<2x8xf32>, vector<2x8xf32> -> vector<2x48xf32>
    %c0_100 = arith.constant 0 : index
    %c0_101 = arith.constant 0 : index
    %336 = vector.load %arg2[%c0_100, %c0_101] : memref<2x48xf32, #tpu.memory_space<vmem>>, vector<2x48xf32>
    tpu.vector_store %arg2[%c0_100, %c0_101], %335 {strides = array<i32>} : memref<2x48xf32, #tpu.memory_space<vmem>>, vector<2x48xf32>,
    return
  }
}

</mosaic_0001>

<llo_original>
// kernel: plan_recognition_forward.1
$region0: #{plan_recognition_forward.1}
  #allocation0 [shape = 'u32[]', space=smem, size = 0x4, offset = 0x4, fixed_abs, tag = 'smem constant byte address 0x4 - core index']
  #allocation1 [shape = 'u32[144,128]{1,0:T(1,128)}', space=vmem, size = 0x12000, scoped, tag = 'internal scratch']
  %s0 = inlined_call_operand.hbm [shape: f32[16,16], index: 0, kind: input, shape index: {}]
  %s1 = inlined_call_operand.hbm [shape: bf16[576,128], index: 1, kind: input, shape index: {}]
  %s2 = inlined_call_operand.vmem [shape: f32[2,48], index: 2, kind: output, shape index: {}]
  %s3 = sld [smem:[#allocation0]]
  $region26: #{plan_recognition_forward.1} parent=0
    _
  %s5 = ssub.s32 1, %s3
  %s6 = scalar_select 0, %s5, %s3
  $region1: #{plan_recognition_forward.1} parent=0
    #allocation2 [shape = 'u8[8192]{0}', space=vmem, size = 0x2000, scoped, tag = 'input window, operand 0, single buffered']
    #allocation3 [shape = 's32[1]{0}', space=sflag, size = 0x4, scoped, tag = 'scoped memory for plan_recognition_forward.1']
    #allocation4 [shape = 'u8[147456]{0}', space=vmem, size = 0x24000, scoped, tag = 'input window, operand 1, single buffered']
    #allocation5 [shape = 's32[1]{0}', space=sflag, size = 0x4, scoped, tag = 'scoped memory for plan_recognition_forward.1']
    %7 = vsyncpa [#allocation3], 0
    %8 = vsyncpa [#allocation5], 0
    // Predicated region
    $region2: #{plan_recognition_forward.1} parent=1 // pred_check
      _
    $region3: #{plan_recognition_forward.1} parent=1 // pred_check_branch
      %10 = sbr.rel (0) target = $region5
    $region4: #{plan_recognition_forward.1} parent=1 // pred_region
      %s12 = ssub.s32 256, 256
      %13 = vsyncadd [#allocation3], %s12
      %s14 = sshll.u32 [#allocation2], 4
      %s15 = int_to_ptr.vmem [resolvable:$true] %s14
      %20 = dma.hbm_to_vmem [thread:$0]  %s0, 256, %s15, [#allocation3], 128, 128, 8
    $region5: #{plan_recognition_forward.1} parent=1 // pred_fallthru
      _
    // Predicated region
    $region6: #{plan_recognition_forward.1} parent=1 // pred_check
      _
    $region7: #{plan_recognition_forward.1} parent=1 // pred_check_branch
      %22 = sbr.rel (0) target = $region9
    $region8: #{plan_recognition_forward.1} parent=1 // pred_region
      %s24 = ssub.s32 4608, 4608
      %25 = vsyncadd [#allocation5], %s24
      %s26 = sshll.u32 [#allocation4], 4
      %s27 = int_to_ptr.vmem [resolvable:$true] %s26
      %32 = dma.hbm_to_vmem [thread:$0]  %s1, 4608, %s27, [#allocation5], 64, 64, 4
    $region9: #{plan_recognition_forward.1} parent=1 // pred_fallthru
      _
    // Predicated region
    $region10: #{plan_recognition_forward.1} parent=1 // pred_check
      _
    $region11: #{plan_recognition_forward.1} parent=1 // pred_check_branch
      %34 = sbr.rel (0) target = $region13
    $region12: #{plan_recognition_forward.1} parent=1 // pred_region
      %35 = dma.done [#allocation3], 256
    $region13: #{plan_recognition_forward.1} parent=1 // pred_fallthru
      _
    // Predicated region
    $region14: #{plan_recognition_forward.1} parent=1 // pred_check
      _
    $region15: #{plan_recognition_forward.1} parent=1 // pred_check_branch
      %37 = sbr.rel (0) target = $region17
    $region16: #{plan_recognition_forward.1} parent=1 // pred_region
      %38 = dma.done [#allocation5], 4608
    $region17: #{plan_recognition_forward.1} parent=1 // pred_fallthru
      _
    %v40 = vld [vmem:[#allocation4 + $0x10] sm:$0xf]
    %v41 = vld [vmem:[#allocation4 + $0x14] sm:$0xf]
    %v42 = vld [vmem:[#allocation4 + $0x18] sm:$0xf]
    %v43 = vld [vmem:[#allocation4 + $0x1c] sm:$0xf]
    %v44 = vld [vmem:[#allocation4 + $0x20] sm:$0xf]
    %v45 = vld [vmem:[#allocation4 + $0x24] sm:$0xf]
    %v46 = vld [vmem:[#allocation4 + $0x28] sm:$0xf]
    %v47 = vld [vmem:[#allocation4 + $0x2c] sm:$0xf]
    %v48 = vld [vmem:[#allocation4 + $0x30] sm:$0xf]
    %v49 = vld [vmem:[#allocation4 + $0x34] sm:$0xf]
    %v50 = vld [vmem:[#allocation4 + $0x38] sm:$0xf]
    %v51 = vld [vmem:[#allocation4 + $0x3c] sm:$0xf]
    %v52 = vld [vmem:[#allocation4 + $0x40] sm:$0xf]
    %v53 = vld [vmem:[#allocation4 + $0x44] sm:$0xf]
    %v54 = vld [vmem:[#allocation4 + $0x48] sm:$0xf]
    %v55 = vld [vmem:[#allocation4 + $0x4c] sm:$0xf]
    %v56 = vunpack.c.l.bf16 %v48
    %v57 = vunpack.c.l.bf16 %v49
    %v58 = vunpack.c.l.bf16 %v50
    %v59 = vunpack.c.l.bf16 %v51
    %v60 = vunpack.c.l.bf16 %v52
    %v61 = vunpack.c.l.bf16 %v53
    %v62 = vunpack.c.l.bf16 %v54
    %v63 = vunpack.c.l.bf16 %v55
    %v64 = vld [vmem:[#allocation4 + $0x110] sm:$0x1]
    %v65 = vld [vmem:[#allocation2] sm:$0xff]
    %v66 = vld [vmem:[#allocation2 + $0x8] sm:$0xff]
    %v67 = vpack.c.bf16 %v66, %v65
    %v68 = vld [vmem:[#allocation4 + $0x8] sm:$0xf]
    %v69 = vld [vmem:[#allocation4 + $0xc] sm:$0xf]
    %v70 = vld [vmem:[#allocation4 + $0x110] sm:$0x2]
    %v71 = vunpack.c.l.bf16 %v70
    %v72 = vlaneseq
    %v73 = vshrl.u32 %v72, 7
    %v74 = vsub.s32 2, %v73
    %v75 = vrot.slane %v71, %v74
    %v78 = vunpack.c.l.b16 %v68
    %v79 = vunpack.c.l.b16 %v69
    %v80 = vpack.c.b16 %v79, %v78
    %vm82 = vcmask 130048
    %v84 = vsel %vm82, %v67, 0
    %86 = vmatprep.subr.bf16.mxu0 0
    %87 = vmatpush1.bf16.msra.mxu0 %v80
    %88 = vmatprep.subr.bf16.mxu0 0
    %89 = vmatpush1.bf16.msra.mxu0 0
    %90 = vmatprep.subr.bf16.mxu0 0
    %91 = vmatpush1.bf16.msra.mxu0 0
    %92 = vmatprep.subr.bf16.mxu0 0
    %93 = vmatpush1.bf16.msra.mxu0 0
    %94 = vmatprep.subr.bf16.mxu0 0
    %95 = vmatpush1.bf16.msra.mxu0 0
    %96 = vmatprep.subr.bf16.mxu0 0
    %97 = vmatpush1.bf16.msra.mxu0 0
    %98 = vmatprep.subr.bf16.mxu0 0
    %99 = vmatpush1.bf16.msra.mxu0 0
    %100 = vmatprep.subr.bf16.mxu0 0
    %101 = vmatpush1.bf16.msra.mxu0 0
    %102 = vmatprep.subr.bf16.mxu0 0
    %103 = vmatpush1.bf16.msra.mxu0 0
    %104 = vmatprep.subr.bf16.mxu0 0
    %105 = vmatpush1.bf16.msra.mxu0 0
    %106 = vmatprep.subr.bf16.mxu0 0
    %107 = vmatpush1.bf16.msra.mxu0 0
    %108 = vmatprep.subr.bf16.mxu0 0
    %109 = vmatpush1.bf16.msra.mxu0 0
    %110 = vmatprep.subr.bf16.mxu0 0
    %111 = vmatpush1.bf16.msra.mxu0 0
    %112 = vmatprep.subr.bf16.mxu0 0
    %113 = vmatpush1.bf16.msra.mxu0 0
    %114 = vmatprep.subr.bf16.mxu0 0
    %115 = vmatpush1.bf16.msra.mxu0 0
    %116 = vmatprep.subr.bf16.mxu0 0
    %117 = vmatpush1.bf16.msra.mxu0 0
    %118 = vmatprep.mubr.bf16.mxu0 0
    %119 = vmatmul.mubr.bf16.gmra.mrb[0].mxu0 %v84
    %v120 = vpop.f32.mrb[0].mxu0
    %v121 = vadd.f32 %v75, %v120
    %v122 = vpop.f32.mrb[0].mxu0
    %v123 = vpop.f32.mrb[0].mxu0
    %v124 = vadd.f32 %v75, %v123
    %v125 = vpop.f32.mrb[0].mxu0
    %126 = vdwg.mxu0
    %v127 = vld [vmem:[#allocation4] sm:$0xf]
    %v128 = vld [vmem:[#allocation4 + $0x4] sm:$0xf]
    %v129 = vunpack.c.l.bf16 %v127
    %v130 = vunpack.c.l.bf16 %v128
    %v131 = vadd.f32 %v121, %v129
    %v132 = vadd.f32 %v124, %v130
    %v133 = vld [vmem:[#allocation4 + $0x110] sm:$0x4]
    %v134 = vunpack.c.l.bf16 %v133
    %vm135 = vcmask 261120
    %v136 = vsel %vm135, %v131, 0.0
    %137 = vadd.xlane.f32.xlu0 %v136
    %v138 = vpop.xlane.xlu0 %137
    %v139 = vsel %vm135, %v132, 0.0
    %140 = vadd.xlane.f32.xlu0 %v139
    %v141 = vpop.xlane.xlu0 %140
    %v142 = vrcp.pop 32.0
    %v143 = vmul.f32 %v138, %v142
    %v144 = vmul.f32 %v141, %v142
    %v145 = vmul.f32 %v131, %v131
    %v146 = vmul.f32 %v132, %v132
    %v147 = vsel %vm135, %v145, 0.0
    %148 = vadd.xlane.f32.xlu0 %v147
    %v149 = vpop.xlane.xlu0 %148
    %v150 = vsel %vm135, %v146, 0.0
    %151 = vadd.xlane.f32.xlu0 %v150
    %v152 = vpop.xlane.xlu0 %151
    %v153 = vmul.f32 %v149, %v142
    %v154 = vmul.f32 %v152, %v142
    %v155 = vmul.f32 %v143, %v143
    %v156 = vmul.f32 %v144, %v144
    %v157 = vsub.f32 %v153, %v155
    %v158 = vsub.f32 %v154, %v156
    %v159 = vmax.f32 %v157, 0.0
    %v160 = vmax.f32 %v158, 0.0
    %v161 = vsub.f32 %v131, %v143
    %v162 = vsub.f32 %v132, %v144
    %v163 = vadd.f32 %v159, 1e-05
    %v164 = vadd.f32 %v160, 1e-05
    %v165 = vrsqrt.pop %v163
    %v166 = vrsqrt.pop %v164
    %v167 = vmul.f32 %v161, %v165
    %v168 = vmul.f32 %v162, %v166
    %v169 = vlaneseq
    %v170 = vshrl.u32 %v169, 7
    %v171 = vsub.s32 3, %v170
    %v172 = vrot.slane %v71, %v171
    %v173 = vmul.f32 %v167, %v172
    %v174 = vmul.f32 %v168, %v172
    %v175 = vlaneseq
    %v176 = vshrl.u32 %v175, 7
    %v177 = vsub.s32 4, %v176
    %v178 = vrot.slane %v134, %v177
    %v179 = vadd.f32 %v173, %v178
    %v180 = vadd.f32 %v174, %v178
    %v181 = vpack.c.bf16 %v180, %v179
    %v182 = vld [vmem:[#allocation4 + $0x50] sm:$0xf]
    %v183 = vld [vmem:[#allocation4 + $0x54] sm:$0xf]
    %v184 = vld [vmem:[#allocation4 + $0x58] sm:$0xf]
    %v185 = vld [vmem:[#allocation4 + $0x5c] sm:$0xf]
    %v186 = vlaneseq
    %v187 = vshrl.u32 %v186, 7
    %v188 = vsub.s32 5, %v187
    %v189 = vrot.slane %v134, %v188
    %v194 = vunpack.c.l.b16 %v182
    %v195 = vunpack.c.l.b16 %v183
    %v196 = vunpack.c.l.b16 %v184
    %v197 = vunpack.c.l.b16 %v185
    %v198 = vpack.c.b16 %v195, %v194
    %v199 = vpack.c.b16 %v197, %v196
    %v203 = vsel %vm135, %v181, 0
    %205 = vmatprep.subr.bf16.mxu0 0
    %206 = vmatpush1.bf16.msra.mxu0 %v198
    %207 = vmatprep.subr.bf16.mxu0 0
    %208 = vmatpush1.bf16.msra.mxu0 %v199
    %209 = vmatprep.subr.bf16.mxu0 0
    %210 = vmatpush1.bf16.msra.mxu0 0
    %211 = vmatprep.subr.bf16.mxu0 0
    %212 = vmatpush1.bf16.msra.mxu0 0
    %213 = vmatprep.subr.bf16.mxu0 0
    %214 = vmatpush1.bf16.msra.mxu0 0
    %215 = vmatprep.subr.bf16.mxu0 0
    %216 = vmatpush1.bf16.msra.mxu0 0
    %217 = vmatprep.subr.bf16.mxu0 0
    %218 = vmatpush1.bf16.msra.mxu0 0
    %219 = vmatprep.subr.bf16.mxu0 0
    %220 = vmatpush1.bf16.msra.mxu0 0
    %221 = vmatprep.subr.bf16.mxu0 0
    %222 = vmatpush1.bf16.msra.mxu0 0
    %223 = vmatprep.subr.bf16.mxu0 0
    %224 = vmatpush1.bf16.msra.mxu0 0
    %225 = vmatprep.subr.bf16.mxu0 0
    %226 = vmatpush1.bf16.msra.mxu0 0
    %227 = vmatprep.subr.bf16.mxu0 0
    %228 = vmatpush1.bf16.msra.mxu0 0
    %229 = vmatprep.subr.bf16.mxu0 0
    %230 = vmatpush1.bf16.msra.mxu0 0
    %231 = vmatprep.subr.bf16.mxu0 0
    %232 = vmatpush1.bf16.msra.mxu0 0
    %233 = vmatprep.subr.bf16.mxu0 0
    %234 = vmatpush1.bf16.msra.mxu0 0
    %235 = vmatprep.subr.bf16.mxu0 0
    %236 = vmatpush1.bf16.msra.mxu0 0
    %237 = vmatprep.mubr.bf16.mxu0 0
    %238 = vmatmul.mubr.bf16.gmra.mrb[0].mxu0 %v203
    %v239 = vpop.f32.mrb[0].mxu0
    %v240 = vadd.f32 %v189, %v239
    %v241 = vpop.f32.mrb[0].mxu0
    %v242 = vpop.f32.mrb[0].mxu0
    %v243 = vadd.f32 %v189, %v242
    %v244 = vpop.f32.mrb[0].mxu0
    %245 = vdwg.mxu0
    %v246 = vpack.c.bf16 %v243, %v240
    %v255 = vunpack.c.l.b16 %v40
    %v256 = vunpack.c.l.b16 %v41
    %v257 = vunpack.c.l.b16 %v42
    %v258 = vunpack.c.l.b16 %v43
    %v259 = vunpack.c.l.b16 %v44
    %v260 = vunpack.c.l.b16 %v45
    %v261 = vunpack.c.l.b16 %v46
    %v262 = vunpack.c.l.b16 %v47
    %v263 = vpack.c.b16 %v256, %v255
    %v264 = vpack.c.b16 %v258, %v257
    %v265 = vpack.c.b16 %v260, %v259
    %v266 = vpack.c.b16 %v262, %v261
    %v271 = vmul.bf16 %v246, %v263
    %v272 = vmul.bf16 %v246, %v264
    %v273 = vmul.bf16 %v246, %v265
    %v274 = vmul.bf16 %v246, %v266
    %276 = vrot.lane.b32.xlu0 %v246, 96
    %v277 = vpop.permute.xlu0 %276
    %v279 = vsel %vm135, %v271, 0
    %v282 = vsel %vm135, %v272, 0
    %v285 = vsel %vm135, %v273, 0
    %v288 = vsel %vm135, %v274, 0
    %v291 = vsel %vm135, %v277, 0
    %293 = vmatprep.subr.bf16.mxu0 0
    %294 = vmatpush1.bf16.xpose.msra.mxu0 %v291
    %295 = vmatprep.subr.bf16.mxu0 0
    %296 = vmatpush1.bf16.xpose.msra.mxu0 0
    %297 = vmatprep.subr.bf16.mxu0 0
    %298 = vmatpush1.bf16.xpose.msra.mxu0 0
    %299 = vmatprep.subr.bf16.mxu0 0
    %300 = vmatpush1.bf16.xpose.msra.mxu0 0
    %301 = vmatprep.subr.bf16.mxu0 0
    %302 = vmatpush1.bf16.xpose.msra.mxu0 0
    %303 = vmatprep.subr.bf16.mxu0 0
    %304 = vmatpush1.bf16.xpose.msra.mxu0 0
    %305 = vmatprep.subr.bf16.mxu0 0
    %306 = vmatpush1.bf16.xpose.msra.mxu0 0
    %307 = vmatprep.subr.bf16.mxu0 0
    %308 = vmatpush1.bf16.xpose.msra.mxu0 0
    %309 = vmatprep.subr.bf16.mxu0 0
    %310 = vmatpush1.bf16.xpose.msra.mxu0 0
    %311 = vmatprep.subr.bf16.mxu0 0
    %312 = vmatpush1.bf16.xpose.msra.mxu0 0
    %313 = vmatprep.subr.bf16.mxu0 0
    %314 = vmatpush1.bf16.xpose.msra.mxu0 0
    %315 = vmatprep.subr.bf16.mxu0 0
    %316 = vmatpush1.bf16.xpose.msra.mxu0 0
    %317 = vmatprep.subr.bf16.mxu0 0
    %318 = vmatpush1.bf16.xpose.msra.mxu0 0
    %319 = vmatprep.subr.bf16.mxu0 0
    %320 = vmatpush1.bf16.xpose.msra.mxu0 0
    %321 = vmatprep.subr.bf16.mxu0 0
    %322 = vmatpush1.bf16.xpose.msra.mxu0 0
    %323 = vmatprep.subr.bf16.mxu0 0
    %324 = vmatpush1.bf16.xpose.msra.mxu0 0
    %325 = vmatprep.mubr.bf16.mxu0 0
    %326 = vmatmul.mubr.bf16.gmra.mrb[0].mxu0 %v279
    %v327 = vpop.f32.mrb[0].mxu0
    %v328 = vadd.f32 %v56, %v327
    %v329 = vpop.f32.mrb[0].mxu0
    %v330 = vpop.f32.mrb[0].mxu0
    %v331 = vadd.f32 %v57, %v330
    %v332 = vpop.f32.mrb[0].mxu0
    %333 = vmatprep.mubr.bf16.mxu0 0
    %334 = vmatmul.mubr.bf16.gmra.mrb[0].mxu0 %v282
    %v335 = vpop.f32.mrb[0].mxu0
    %v336 = vadd.f32 %v58, %v335
    %v337 = vpop.f32.mrb[0].mxu0
    %v338 = vpop.f32.mrb[0].mxu0
    %v339 = vadd.f32 %v59, %v338
    %v340 = vpop.f32.mrb[0].mxu0
    %341 = vmatprep.mubr.bf16.mxu0 0
    %342 = vmatmul.mubr.bf16.gmra.mrb[0].mxu0 %v285
    %v343 = vpop.f32.mrb[0].mxu0
    %v344 = vadd.f32 %v60, %v343
    %v345 = vpop.f32.mrb[0].mxu0
    %v346 = vpop.f32.mrb[0].mxu0
    %v347 = vadd.f32 %v61, %v346
    %v348 = vpop.f32.mrb[0].mxu0
    %349 = vmatprep.mubr.bf16.mxu0 0
    %350 = vmatmul.mubr.bf16.gmra.mrb[0].mxu0 %v288
    %v351 = vpop.f32.mrb[0].mxu0
    %v352 = vadd.f32 %v62, %v351
    %v353 = vpop.f32.mrb[0].mxu0
    %v354 = vpop.f32.mrb[0].mxu0
    %v355 = vadd.f32 %v63, %v354
    %v356 = vpop.f32.mrb[0].mxu0
    %357 = vdwg.mxu0
    %v358 = vsel %vm82, %v328, -inf
    %359 = vmax.xlane.f32.xlu0 %v358
    %v360 = vpop.xlane.xlu0 %359
    %v361 = vsel %vm82, %v331, -inf
    %362 = vmax.xlane.f32.xlu0 %v361
    %v363 = vpop.xlane.xlu0 %362
    %v364 = vsel %vm82, %v336, -inf
    %365 = vmax.xlane.f32.xlu0 %v364
    %v366 = vpop.xlane.xlu0 %365
    %v367 = vsel %vm82, %v339, -inf
    %368 = vmax.xlane.f32.xlu0 %v367
    %v369 = vpop.xlane.xlu0 %368
    %v370 = vsel %vm82, %v344, -inf
    %371 = vmax.xlane.f32.xlu0 %v370
    %v372 = vpop.xlane.xlu0 %371
    %v373 = vsel %vm82, %v347, -inf
    %374 = vmax.xlane.f32.xlu0 %v373
    %v375 = vpop.xlane.xlu0 %374
    %v376 = vsel %vm82, %v352, -inf
    %377 = vmax.xlane.f32.xlu0 %v376
    %v378 = vpop.xlane.xlu0 %377
    %v379 = vsel %vm82, %v355, -inf
    %380 = vmax.xlane.f32.xlu0 %v379
    %v381 = vpop.xlane.xlu0 %380
    %v382 = vsub.f32 %v328, %v360
    %v383 = vsub.f32 %v331, %v363
    %v384 = vsub.f32 %v336, %v366
    %v385 = vsub.f32 %v339, %v369
    %v386 = vsub.f32 %v344, %v372
    %v387 = vsub.f32 %v347, %v375
    %v388 = vsub.f32 %v352, %v378
    %v389 = vsub.f32 %v355, %v381
    %v390 = vmul.f32 %v382, 1.442695
    %v391 = vpow.pop %v390
    %v392 = vmul.f32 %v383, 1.442695
    %v393 = vpow.pop %v392
    %v394 = vmul.f32 %v384, 1.442695
    %v395 = vpow.pop %v394
    %v396 = vmul.f32 %v385, 1.442695
    %v397 = vpow.pop %v396
    %v398 = vmul.f32 %v386, 1.442695
    %v399 = vpow.pop %v398
    %v400 = vmul.f32 %v387, 1.442695
    %v401 = vpow.pop %v400
    %v402 = vmul.f32 %v388, 1.442695
    %v403 = vpow.pop %v402
    %v404 = vmul.f32 %v389, 1.442695
    %v405 = vpow.pop %v404
    %v406 = vsel %vm82, %v391, 0.0
    %407 = vadd.xlane.f32.xlu0 %v406
    %v408 = vpop.xlane.xlu0 %407
    %v409 = vsel %vm82, %v393, 0.0
    %410 = vadd.xlane.f32.xlu0 %v409
    %v411 = vpop.xlane.xlu0 %410
    %v412 = vsel %vm82, %v395, 0.0
    %413 = vadd.xlane.f32.xlu0 %v412
    %v414 = vpop.xlane.xlu0 %413
    %v415 = vsel %vm82, %v397, 0.0
    %416 = vadd.xlane.f32.xlu0 %v415
    %v417 = vpop.xlane.xlu0 %416
    %v418 = vsel %vm82, %v399, 0.0
    %419 = vadd.xlane.f32.xlu0 %v418
    %v420 = vpop.xlane.xlu0 %419
    %v421 = vsel %vm82, %v401, 0.0
    %422 = vadd.xlane.f32.xlu0 %v421
    %v423 = vpop.xlane.xlu0 %422
    %v424 = vsel %vm82, %v403, 0.0
    %425 = vadd.xlane.f32.xlu0 %v424
    %v426 = vpop.xlane.xlu0 %425
    %v427 = vsel %vm82, %v405, 0.0
    %428 = vadd.xlane.f32.xlu0 %v427
    %v429 = vpop.xlane.xlu0 %428
    %v430 = vrcp.pop %v408
    %v431 = vrcp.pop %v411
    %v432 = vrcp.pop %v414
    %v433 = vrcp.pop %v417
    %v434 = vrcp.pop %v420
    %v435 = vrcp.pop %v423
    %v436 = vrcp.pop %v426
    %v437 = vrcp.pop %v429
    %v438 = vmul.f32 %v391, %v430
    %v439 = vmul.f32 %v393, %v431
    %v440 = vmul.f32 %v395, %v432
    %v441 = vmul.f32 %v397, %v433
    %v442 = vmul.f32 %v399, %v434
    %v443 = vmul.f32 %v401, %v435
    %v444 = vmul.f32 %v403, %v436
    %v445 = vmul.f32 %v405, %v437
    %v446 = vpack.c.bf16 %v439, %v438
    %v447 = vpack.c.bf16 %v441, %v440
    %v448 = vpack.c.bf16 %v443, %v442
    %v449 = vpack.c.bf16 %v445, %v444
    %450 = vrot.lane.b32.xlu0 %v246, 64
    %v451 = vpop.permute.xlu0 %450
    %v454 = vsel %vm82, %v446, 0
    %v457 = vsel %vm82, %v447, 0
    %v460 = vsel %vm82, %v448, 0
    %v463 = vsel %vm82, %v449, 0
    %465 = vmatprep.subr.bf16.mxu0 0
    %466 = vmatpush1.bf16.msra.mxu0 %v451
    %467 = vmatprep.subr.bf16.mxu0 0
    %468 = vmatpush1.bf16.msra.mxu0 0
    %469 = vmatprep.subr.bf16.mxu0 0
    %470 = vmatpush1.bf16.msra.mxu0 0
    %471 = vmatprep.subr.bf16.mxu0 0
    %472 = vmatpush1.bf16.msra.mxu0 0
    %473 = vmatprep.subr.bf16.mxu0 0
    %474 = vmatpush1.bf16.msra.mxu0 0
    %475 = vmatprep.subr.bf16.mxu0 0
    %476 = vmatpush1.bf16.msra.mxu0 0
    %477 = vmatprep.subr.bf16.mxu0 0
    %478 = vmatpush1.bf16.msra.mxu0 0
    %479 = vmatprep.subr.bf16.mxu0 0
    %480 = vmatpush1.bf16.msra.mxu0 0
    %481 = vmatprep.subr.bf16.mxu0 0
    %482 = vmatpush1.bf16.msra.mxu0 0
    %483 = vmatprep.subr.bf16.mxu0 0
    %484 = vmatpush1.bf16.msra.mxu0 0
    %485 = vmatprep.subr.bf16.mxu0 0
    %486 = vmatpush1.bf16.msra.mxu0 0
    %487 = vmatprep.subr.bf16.mxu0 0
    %488 = vmatpush1.bf16.msra.mxu0 0
    %489 = vmatprep.subr.bf16.mxu0 0
    %490 = vmatpush1.bf16.msra.mxu0 0
    %491 = vmatprep.subr.bf16.mxu0 0
    %492 = vmatpush1.bf16.msra.mxu0 0
    %493 = vmatprep.subr.bf16.mxu0 0
    %494 = vmatpush1.bf16.msra.mxu0 0
    %495 = vmatprep.subr.bf16.mxu0 0
    %496 = vmatpush1.bf16.msra.mxu0 0
    %497 = vmatprep.mubr.bf16.mxu0 0
    %498 = vmatmul.mubr.bf16.gmra.mrb[0].mxu0 %v454
    %v499 = vpop.f32.mrb[0].mxu0
    %v500 = vadd.f32 0.0, %v499
    %v501 = vpop.f32.mrb[0].mxu0
    %v502 = vpop.f32.mrb[0].mxu0
    %v503 = vadd.f32 0.0, %v502
    %v504 = vpop.f32.mrb[0].mxu0
    %505 = vmatprep.mubr.bf16.mxu0 0
    %506 = vmatmul.mubr.bf16.gmra.mrb[0].mxu0 %v457
    %v507 = vpop.f32.mrb[0].mxu0
    %v508 = vadd.f32 0.0, %v507
    %v509 = vpop.f32.mrb[0].mxu0
    %v510 = vpop.f32.mrb[0].mxu0
    %v511 = vadd.f32 0.0, %v510
    %v512 = vpop.f32.mrb[0].mxu0
    %513 = vmatprep.mubr.bf16.mxu0 0
    %514 = vmatmul.mubr.bf16.gmra.mrb[0].mxu0 %v460
    %v515 = vpop.f32.mrb[0].mxu0
    %v516 = vadd.f32 0.0, %v515
    %v517 = vpop.f32.mrb[0].mxu0
    %v518 = vpop.f32.mrb[0].mxu0
    %v519 = vadd.f32 0.0, %v518
    %v520 = vpop.f32.mrb[0].mxu0
    %521 = vmatprep.mubr.bf16.mxu0 0
    %522 = vmatmul.mubr.bf16.gmra.mrb[0].mxu0 %v463
    %v523 = vpop.f32.mrb[0].mxu0
    %v524 = vadd.f32 0.0, %v523
    %v525 = vpop.f32.mrb[0].mxu0
    %v526 = vpop.f32.mrb[0].mxu0
    %v527 = vadd.f32 0.0, %v526
    %v528 = vpop.f32.mrb[0].mxu0
    %529 = vdwg.mxu0
    %v530 = vpack.c.bf16 %v503, %v500
    %v531 = vpack.c.bf16 %v511, %v508
    %v532 = vpack.c.bf16 %v519, %v516
    %v533 = vpack.c.bf16 %v527, %v524
    %v534 = vmul.bf16 %v530, %v263
    %v535 = vmul.bf16 %v531, %v264
    %v536 = vmul.bf16 %v532, %v265
    %v537 = vmul.bf16 %v533, %v266
    %v538 = vadd.bf16 %v534, %v535
    %v539 = vadd.bf16 %v538, %v536
    %v540 = vadd.bf16 %v539, %v537
    %v541 = vld [vmem:[#allocation4 + $0x60] sm:$0xf]
    %v542 = vld [vmem:[#allocation4 + $0x64] sm:$0xf]
    %v543 = vld [vmem:[#allocation4 + $0x68] sm:$0xf]
    %v544 = vld [vmem:[#allocation4 + $0x6c] sm:$0xf]
    %v545 = vld [vmem:[#allocation4 + $0x110] sm:$0x8]
    %v546 = vunpack.c.l.bf16 %v545
    %v547 = vlaneseq
    %v548 = vshrl.u32 %v547, 7
    %v549 = vsub.s32 6, %v548
    %v550 = vrot.slane %v546, %v549
    %v555 = vunpack.c.l.b16 %v541
    %v556 = vunpack.c.l.b16 %v542
    %v557 = vunpack.c.l.b16 %v543
    %v558 = vunpack.c.l.b16 %v544
    %v559 = vpack.c.b16 %v556, %v555
    %v560 = vpack.c.b16 %v558, %v557
    %v564 = vsel %vm135, %v540, 0
    %566 = vmatprep.subr.bf16.mxu0 0
    %567 = vmatpush1.bf16.msra.mxu0 %v559
    %568 = vmatprep.subr.bf16.mxu0 0
    %569 = vmatpush1.bf16.msra.mxu0 %v560
    %570 = vmatprep.subr.bf16.mxu0 0
    %571 = vmatpush1.bf16.msra.mxu0 0
    %572 = vmatprep.subr.bf16.mxu0 0
    %573 = vmatpush1.bf16.msra.mxu0 0
    %574 = vmatprep.subr.bf16.mxu0 0
    %575 = vmatpush1.bf16.msra.mxu0 0
    %576 = vmatprep.subr.bf16.mxu0 0
    %577 = vmatpush1.bf16.msra.mxu0 0
    %578 = vmatprep.subr.bf16.mxu0 0
    %579 = vmatpush1.bf16.msra.mxu0 0
    %580 = vmatprep.subr.bf16.mxu0 0
    %581 = vmatpush1.bf16.msra.mxu0 0
    %582 = vmatprep.subr.bf16.mxu0 0
    %583 = vmatpush1.bf16.msra.mxu0 0
    %584 = vmatprep.subr.bf16.mxu0 0
    %585 = vmatpush1.bf16.msra.mxu0 0
    %586 = vmatprep.subr.bf16.mxu0 0
    %587 = vmatpush1.bf16.msra.mxu0 0
    %588 = vmatprep.subr.bf16.mxu0 0
    %589 = vmatpush1.bf16.msra.mxu0 0
    %590 = vmatprep.subr.bf16.mxu0 0
    %591 = vmatpush1.bf16.msra.mxu0 0
    %592 = vmatprep.subr.bf16.mxu0 0
    %593 = vmatpush1.bf16.msra.mxu0 0
    %594 = vmatprep.subr.bf16.mxu0 0
    %595 = vmatpush1.bf16.msra.mxu0 0
    %596 = vmatprep.subr.bf16.mxu0 0
    %597 = vmatpush1.bf16.msra.mxu0 0
    %598 = vmatprep.mubr.bf16.mxu0 0
    %599 = vmatmul.mubr.bf16.gmra.mrb[0].mxu0 %v564
    %v600 = vpop.f32.mrb[0].mxu0
    %v601 = vadd.f32 %v550, %v600
    %v602 = vpop.f32.mrb[0].mxu0
    %v603 = vpop.f32.mrb[0].mxu0
    %v604 = vadd.f32 %v550, %v603
    %v605 = vpop.f32.mrb[0].mxu0
    %606 = vdwg.mxu0
    %v607 = vadd.f32 %v179, %v601
    %v608 = vadd.f32 %v180, %v604
    %v609 = vld [vmem:[#allocation4 + $0x114] sm:$0x1]
    %v610 = vunpack.c.l.bf16 %v609
    %v611 = vsel %vm135, %v607, 0.0
    %612 = vadd.xlane.f32.xlu0 %v611
    %v613 = vpop.xlane.xlu0 %612
    %v614 = vsel %vm135, %v608, 0.0
    %615 = vadd.xlane.f32.xlu0 %v614
    %v616 = vpop.xlane.xlu0 %615
    %v617 = vmul.f32 %v613, %v142
    %v618 = vmul.f32 %v616, %v142
    %v619 = vmul.f32 %v607, %v607
    %v620 = vmul.f32 %v608, %v608
    %v621 = vsel %vm135, %v619, 0.0
    %622 = vadd.xlane.f32.xlu0 %v621
    %v623 = vpop.xlane.xlu0 %622
    %v624 = vsel %vm135, %v620, 0.0
    %625 = vadd.xlane.f32.xlu0 %v624
    %v626 = vpop.xlane.xlu0 %625
    %v627 = vmul.f32 %v623, %v142
    %v628 = vmul.f32 %v626, %v142
    %v629 = vmul.f32 %v617, %v617
    %v630 = vmul.f32 %v618, %v618
    %v631 = vsub.f32 %v627, %v629
    %v632 = vsub.f32 %v628, %v630
    %v633 = vmax.f32 %v631, 0.0
    %v634 = vmax.f32 %v632, 0.0
    %v635 = vsub.f32 %v607, %v617
    %v636 = vsub.f32 %v608, %v618
    %v637 = vadd.f32 %v633, 1e-05
    %v638 = vadd.f32 %v634, 1e-05
    %v639 = vrsqrt.pop %v637
    %v640 = vrsqrt.pop %v638
    %v641 = vmul.f32 %v635, %v639
    %v642 = vmul.f32 %v636, %v640
    %v643 = vlaneseq
    %v644 = vshrl.u32 %v643, 7
    %v645 = vsub.s32 7, %v644
    %v646 = vrot.slane %v546, %v645
    %v647 = vmul.f32 %v641, %v646
    %v648 = vmul.f32 %v642, %v646
    %v649 = vlaneseq
    %v650 = vshrl.u32 %v649, 7
    %v651 = vsub.s32 0, %v650
    %v652 = vrot.slane %v610, %v651
    %v653 = vadd.f32 %v647, %v652
    %v654 = vadd.f32 %v648, %v652
    %v655 = vpack.c.bf16 %v654, %v653
    %v656 = vld [vmem:[#allocation4 + $0x70] sm:$0xf]
    %v657 = vld [vmem:[#allocation4 + $0x74] sm:$0xf]
    %v658 = vld [vmem:[#allocation4 + $0x78] sm:$0xf]
    %v659 = vld [vmem:[#allocation4 + $0x7c] sm:$0xf]
    %v660 = vlaneseq
    %v661 = vshrl.u32 %v660, 7
    %v662 = vsub.s32 1, %v661
    %v663 = vrot.slane %v610, %v662
    %v668 = vunpack.c.l.b16 %v656
    %v669 = vunpack.c.l.b16 %v657
    %v670 = vunpack.c.l.b16 %v658
    %v671 = vunpack.c.l.b16 %v659
    %v672 = vpack.c.b16 %v669, %v668
    %v673 = vpack.c.b16 %v671, %v670
    %v677 = vsel %vm135, %v655, 0
    %679 = vmatprep.subr.bf16.mxu0 0
    %680 = vmatpush1.bf16.msra.mxu0 %v672
    %681 = vmatprep.subr.bf16.mxu0 0
    %682 = vmatpush1.bf16.msra.mxu0 %v673
    %683 = vmatprep.subr.bf16.mxu0 0
    %684 = vmatpush1.bf16.msra.mxu0 0
    %685 = vmatprep.subr.bf16.mxu0 0
    %686 = vmatpush1.bf16.msra.mxu0 0
    %687 = vmatprep.subr.bf16.mxu0 0
    %688 = vmatpush1.bf16.msra.mxu0 0
    %689 = vmatprep.subr.bf16.mxu0 0
    %690 = vmatpush1.bf16.msra.mxu0 0
    %691 = vmatprep.subr.bf16.mxu0 0
    %692 = vmatpush1.bf16.msra.mxu0 0
    %693 = vmatprep.subr.bf16.mxu0 0
    %694 = vmatpush1.bf16.msra.mxu0 0
    %695 = vmatprep.subr.bf16.mxu0 0
    %696 = vmatpush1.bf16.msra.mxu0 0
    %697 = vmatprep.subr.bf16.mxu0 0
    %698 = vmatpush1.bf16.msra.mxu0 0
    %699 = vmatprep.subr.bf16.mxu0 0
    %700 = vmatpush1.bf16.msra.mxu0 0
    %701 = vmatprep.subr.bf16.mxu0 0
    %702 = vmatpush1.bf16.msra.mxu0 0
    %703 = vmatprep.subr.bf16.mxu0 0
    %704 = vmatpush1.bf16.msra.mxu0 0
    %705 = vmatprep.subr.bf16.mxu0 0
    %706 = vmatpush1.bf16.msra.mxu0 0
    %707 = vmatprep.subr.bf16.mxu0 0
    %708 = vmatpush1.bf16.msra.mxu0 0
    %709 = vmatprep.subr.bf16.mxu0 0
    %710 = vmatpush1.bf16.msra.mxu0 0
    %711 = vmatprep.mubr.bf16.mxu0 0
    %712 = vmatmul.mubr.bf16.gmra.mrb[0].mxu0 %v677
    %v713 = vpop.f32.mrb[0].mxu0
    %v714 = vadd.f32 %v663, %v713
    %v715 = vpop.f32.mrb[0].mxu0
    %v716 = vpop.f32.mrb[0].mxu0
    %v717 = vadd.f32 %v663, %v716
    %v718 = vpop.f32.mrb[0].mxu0
    %719 = vdwg.mxu0
    %v720 = vmax.f32 %v714, 0.0
    %v721 = vmax.f32 %v717, 0.0
    %v722 = vpack.c.bf16 %v721, %v720
    %v723 = vld [vmem:[#allocation4 + $0x80] sm:$0xf]
    %v724 = vld [vmem:[#allocation4 + $0x84] sm:$0xf]
    %v725 = vld [vmem:[#allocation4 + $0x88] sm:$0xf]
    %v726 = vld [vmem:[#allocation4 + $0x8c] sm:$0xf]
    %v727 = vld [vmem:[#allocation4 + $0x90] sm:$0xf]
    %v728 = vld [vmem:[#allocation4 + $0x94] sm:$0xf]
    %v729 = vld [vmem:[#allocation4 + $0x98] sm:$0xf]
    %v730 = vld [vmem:[#allocation4 + $0x9c] sm:$0xf]
    %v731 = vld [vmem:[#allocation4 + $0x114] sm:$0x2]
    %v732 = vunpack.c.l.bf16 %v731
    %v733 = vlaneseq
    %v734 = vshrl.u32 %v733, 7
    %v735 = vsub.s32 2, %v734
    %v736 = vrot.slane %v732, %v735
    %v745 = vunpack.c.l.b16 %v723
    %v746 = vunpack.c.l.b16 %v724
    %v747 = vunpack.c.l.b16 %v725
    %v748 = vunpack.c.l.b16 %v726
    %v749 = vunpack.c.l.b16 %v727
    %v750 = vunpack.c.l.b16 %v728
    %v751 = vunpack.c.l.b16 %v729
    %v752 = vunpack.c.l.b16 %v730
    %v753 = vpack.c.b16 %v746, %v745
    %v754 = vpack.c.b16 %v748, %v747
    %v755 = vpack.c.b16 %v750, %v749
    %v756 = vpack.c.b16 %v752, %v751
    %vm761 = vcmask 523264
    %v763 = vsel %vm761, %v722, 0
    %765 = vmatprep.subr.bf16.mxu0 0
    %766 = vmatpush1.bf16.msra.mxu0 %v753
    %767 = vmatprep.subr.bf16.mxu0 0
    %768 = vmatpush1.bf16.msra.mxu0 %v754
    %769 = vmatprep.subr.bf16.mxu0 0
    %770 = vmatpush1.bf16.msra.mxu0 %v755
    %771 = vmatprep.subr.bf16.mxu0 0
    %772 = vmatpush1.bf16.msra.mxu0 %v756
    %773 = vmatprep.subr.bf16.mxu0 0
    %774 = vmatpush1.bf16.msra.mxu0 0
    %775 = vmatprep.subr.bf16.mxu0 0
    %776 = vmatpush1.bf16.msra.mxu0 0
    %777 = vmatprep.subr.bf16.mxu0 0
    %778 = vmatpush1.bf16.msra.mxu0 0
    %779 = vmatprep.subr.bf16.mxu0 0
    %780 = vmatpush1.bf16.msra.mxu0 0
    %781 = vmatprep.subr.bf16.mxu0 0
    %782 = vmatpush1.bf16.msra.mxu0 0
    %783 = vmatprep.subr.bf16.mxu0 0
    %784 = vmatpush1.bf16.msra.mxu0 0
    %785 = vmatprep.subr.bf16.mxu0 0
    %786 = vmatpush1.bf16.msra.mxu0 0
    %787 = vmatprep.subr.bf16.mxu0 0
    %788 = vmatpush1.bf16.msra.mxu0 0
    %789 = vmatprep.subr.bf16.mxu0 0
    %790 = vmatpush1.bf16.msra.mxu0 0
    %791 = vmatprep.subr.bf16.mxu0 0
    %792 = vmatpush1.bf16.msra.mxu0 0
    %793 = vmatprep.subr.bf16.mxu0 0
    %794 = vmatpush1.bf16.msra.mxu0 0
    %795 = vmatprep.subr.bf16.mxu0 0
    %796 = vmatpush1.bf16.msra.mxu0 0
    %797 = vmatprep.mubr.bf16.mxu0 0
    %798 = vmatmul.mubr.bf16.gmra.mrb[0].mxu0 %v763
    %v799 = vpop.f32.mrb[0].mxu0
    %v800 = vadd.f32 %v736, %v799
    %v801 = vpop.f32.mrb[0].mxu0
    %v802 = vpop.f32.mrb[0].mxu0
    %v803 = vadd.f32 %v736, %v802
    %v804 = vpop.f32.mrb[0].mxu0
    %805 = vdwg.mxu0
    %v806 = vadd.f32 %v653, %v800
    %v807 = vadd.f32 %v654, %v803
    %v808 = vld [vmem:[#allocation4 + $0x114] sm:$0x4]
    %v809 = vunpack.c.l.bf16 %v808
    %v810 = vsel %vm135, %v806, 0.0
    %811 = vadd.xlane.f32.xlu0 %v810
    %v812 = vpop.xlane.xlu0 %811
    %v813 = vsel %vm135, %v807, 0.0
    %814 = vadd.xlane.f32.xlu0 %v813
    %v815 = vpop.xlane.xlu0 %814
    %v816 = vmul.f32 %v812, %v142
    %v817 = vmul.f32 %v815, %v142
    %v818 = vmul.f32 %v806, %v806
    %v819 = vmul.f32 %v807, %v807
    %v820 = vsel %vm135, %v818, 0.0
    %821 = vadd.xlane.f32.xlu0 %v820
    %v822 = vpop.xlane.xlu0 %821
    %v823 = vsel %vm135, %v819, 0.0
    %824 = vadd.xlane.f32.xlu0 %v823
    %v825 = vpop.xlane.xlu0 %824
    %v826 = vmul.f32 %v822, %v142
    %v827 = vmul.f32 %v825, %v142
    %v828 = vmul.f32 %v816, %v816
    %v829 = vmul.f32 %v817, %v817
    %v830 = vsub.f32 %v826, %v828
    %v831 = vsub.f32 %v827, %v829
    %v832 = vmax.f32 %v830, 0.0
    %v833 = vmax.f32 %v831, 0.0
    %v834 = vsub.f32 %v806, %v816
    %v835 = vsub.f32 %v807, %v817
    %v836 = vadd.f32 %v832, 1e-05
    %v837 = vadd.f32 %v833, 1e-05
    %v838 = vrsqrt.pop %v836
    %v839 = vrsqrt.pop %v837
    %v840 = vmul.f32 %v834, %v838
    %v841 = vmul.f32 %v835, %v839
    %v842 = vlaneseq
    %v843 = vshrl.u32 %v842, 7
    %v844 = vsub.s32 3, %v843
    %v845 = vrot.slane %v732, %v844
    %v846 = vmul.f32 %v840, %v845
    %v847 = vmul.f32 %v841, %v845
    %v848 = vlaneseq
    %v849 = vshrl.u32 %v848, 7
    %v850 = vsub.s32 4, %v849
    %v851 = vrot.slane %v809, %v850
    %v852 = vadd.f32 %v846, %v851
    %v853 = vadd.f32 %v847, %v851
    %v854 = vpack.c.bf16 %v853, %v852
    %v855 = vld [vmem:[#allocation4 + $0xa0] sm:$0xf]
    %v856 = vld [vmem:[#allocation4 + $0xa4] sm:$0xf]
    %v857 = vld [vmem:[#allocation4 + $0xa8] sm:$0xf]
    %v858 = vld [vmem:[#allocation4 + $0xac] sm:$0xf]
    %v859 = vlaneseq
    %v860 = vshrl.u32 %v859, 7
    %v861 = vsub.s32 5, %v860
    %v862 = vrot.slane %v809, %v861
    %v867 = vunpack.c.l.b16 %v855
    %v868 = vunpack.c.l.b16 %v856
    %v869 = vunpack.c.l.b16 %v857
    %v870 = vunpack.c.l.b16 %v858
    %v871 = vpack.c.b16 %v868, %v867
    %v872 = vpack.c.b16 %v870, %v869
    %v876 = vsel %vm135, %v854, 0
    %878 = vmatprep.subr.bf16.mxu0 0
    %879 = vmatpush1.bf16.msra.mxu0 %v871
    %880 = vmatprep.subr.bf16.mxu0 0
    %881 = vmatpush1.bf16.msra.mxu0 %v872
    %882 = vmatprep.subr.bf16.mxu0 0
    %883 = vmatpush1.bf16.msra.mxu0 0
    %884 = vmatprep.subr.bf16.mxu0 0
    %885 = vmatpush1.bf16.msra.mxu0 0
    %886 = vmatprep.subr.bf16.mxu0 0
    %887 = vmatpush1.bf16.msra.mxu0 0
    %888 = vmatprep.subr.bf16.mxu0 0
    %889 = vmatpush1.bf16.msra.mxu0 0
    %890 = vmatprep.subr.bf16.mxu0 0
    %891 = vmatpush1.bf16.msra.mxu0 0
    %892 = vmatprep.subr.bf16.mxu0 0
    %893 = vmatpush1.bf16.msra.mxu0 0
    %894 = vmatprep.subr.bf16.mxu0 0
    %895 = vmatpush1.bf16.msra.mxu0 0
    %896 = vmatprep.subr.bf16.mxu0 0
    %897 = vmatpush1.bf16.msra.mxu0 0
    %898 = vmatprep.subr.bf16.mxu0 0
    %899 = vmatpush1.bf16.msra.mxu0 0
    %900 = vmatprep.subr.bf16.mxu0 0
    %901 = vmatpush1.bf16.msra.mxu0 0
    %902 = vmatprep.subr.bf16.mxu0 0
    %903 = vmatpush1.bf16.msra.mxu0 0
    %904 = vmatprep.subr.bf16.mxu0 0
    %905 = vmatpush1.bf16.msra.mxu0 0
    %906 = vmatprep.subr.bf16.mxu0 0
    %907 = vmatpush1.bf16.msra.mxu0 0
    %908 = vmatprep.subr.bf16.mxu0 0
    %909 = vmatpush1.bf16.msra.mxu0 0
    %910 = vmatprep.mubr.bf16.mxu0 0
    %911 = vmatmul.mubr.bf16.gmra.mrb[0].mxu0 %v876
    %v912 = vpop.f32.mrb[0].mxu0
    %v913 = vadd.f32 %v862, %v912
    %v914 = vpop.f32.mrb[0].mxu0
    %v915 = vpop.f32.mrb[0].mxu0
    %v916 = vadd.f32 %v862, %v915
    %v917 = vpop.f32.mrb[0].mxu0
    %918 = vdwg.mxu0
    %v919 = vpack.c.bf16 %v916, %v913
    %v920 = vmul.bf16 %v919, %v263
    %v921 = vmul.bf16 %v919, %v264
    %v922 = vmul.bf16 %v919, %v265
    %v923 = vmul.bf16 %v919, %v266
    %925 = vrot.lane.b32.xlu0 %v919, 96
    %v926 = vpop.permute.xlu0 %925
    %v928 = vsel %vm135, %v920, 0
    %v931 = vsel %vm135, %v921, 0
    %v934 = vsel %vm135, %v922, 0
    %v937 = vsel %vm135, %v923, 0
    %v940 = vsel %vm135, %v926, 0
    %942 = vmatprep.subr.bf16.mxu0 0
    %943 = vmatpush1.bf16.xpose.msra.mxu0 %v940
    %944 = vmatprep.subr.bf16.mxu0 0
    %945 = vmatpush1.bf16.xpose.msra.mxu0 0
    %946 = vmatprep.subr.bf16.mxu0 0
    %947 = vmatpush1.bf16.xpose.msra.mxu0 0
    %948 = vmatprep.subr.bf16.mxu0 0
    %949 = vmatpush1.bf16.xpose.msra.mxu0 0
    %950 = vmatprep.subr.bf16.mxu0 0
    %951 = vmatpush1.bf16.xpose.msra.mxu0 0
    %952 = vmatprep.subr.bf16.mxu0 0
    %953 = vmatpush1.bf16.xpose.msra.mxu0 0
    %954 = vmatprep.subr.bf16.mxu0 0
    %955 = vmatpush1.bf16.xpose.msra.mxu0 0
    %956 = vmatprep.subr.bf16.mxu0 0
    %957 = vmatpush1.bf16.xpose.msra.mxu0 0
    %958 = vmatprep.subr.bf16.mxu0 0
    %959 = vmatpush1.bf16.xpose.msra.mxu0 0
    %960 = vmatprep.subr.bf16.mxu0 0
    %961 = vmatpush1.bf16.xpose.msra.mxu0 0
    %962 = vmatprep.subr.bf16.mxu0 0
    %963 = vmatpush1.bf16.xpose.msra.mxu0 0
    %964 = vmatprep.subr.bf16.mxu0 0
    %965 = vmatpush1.bf16.xpose.msra.mxu0 0
    %966 = vmatprep.subr.bf16.mxu0 0
    %967 = vmatpush1.bf16.xpose.msra.mxu0 0
    %968 = vmatprep.subr.bf16.mxu0 0
    %969 = vmatpush1.bf16.xpose.msra.mxu0 0
    %970 = vmatprep.subr.bf16.mxu0 0
    %971 = vmatpush1.bf16.xpose.msra.mxu0 0
    %972 = vmatprep.subr.bf16.mxu0 0
    %973 = vmatpush1.bf16.xpose.msra.mxu0 0
    %974 = vmatprep.mubr.bf16.mxu0 0
    %975 = vmatmul.mubr.bf16.gmra.mrb[0].mxu0 %v928
    %v976 = vpop.f32.mrb[0].mxu0
    %v977 = vadd.f32 %v56, %v976
    %v978 = vpop.f32.mrb[0].mxu0
    %v979 = vpop.f32.mrb[0].mxu0
    %v980 = vadd.f32 %v57, %v979
    %v981 = vpop.f32.mrb[0].mxu0
    %982 = vmatprep.mubr.bf16.mxu0 0
    %983 = vmatmul.mubr.bf16.gmra.mrb[0].mxu0 %v931
    %v984 = vpop.f32.mrb[0].mxu0
    %v985 = vadd.f32 %v58, %v984
    %v986 = vpop.f32.mrb[0].mxu0
    %v987 = vpop.f32.mrb[0].mxu0
    %v988 = vadd.f32 %v59, %v987
    %v989 = vpop.f32.mrb[0].mxu0
    %990 = vmatprep.mubr.bf16.mxu0 0
    %991 = vmatmul.mubr.bf16.gmra.mrb[0].mxu0 %v934
    %v992 = vpop.f32.mrb[0].mxu0
    %v993 = vadd.f32 %v60, %v992
    %v994 = vpop.f32.mrb[0].mxu0
    %v995 = vpop.f32.mrb[0].mxu0
    %v996 = vadd.f32 %v61, %v995
    %v997 = vpop.f32.mrb[0].mxu0
    %998 = vmatprep.mubr.bf16.mxu0 0
    %999 = vmatmul.mubr.bf16.gmra.mrb[0].mxu0 %v937
    %v1000 = vpop.f32.mrb[0].mxu0
    %v1001 = vadd.f32 %v62, %v1000
    %v1002 = vpop.f32.mrb[0].mxu0
    %v1003 = vpop.f32.mrb[0].mxu0
    %v1004 = vadd.f32 %v63, %v1003
    %v1005 = vpop.f32.mrb[0].mxu0
    %1006 = vdwg.mxu0
    %v1007 = vsel %vm82, %v977, -inf
    %1008 = vmax.xlane.f32.xlu0 %v1007
    %v1009 = vpop.xlane.xlu0 %1008
    %v1010 = vsel %vm82, %v980, -inf
    %1011 = vmax.xlane.f32.xlu0 %v1010
    %v1012 = vpop.xlane.xlu0 %1011
    %v1013 = vsel %vm82, %v985, -inf
    %1014 = vmax.xlane.f32.xlu0 %v1013
    %v1015 = vpop.xlane.xlu0 %1014
    %v1016 = vsel %vm82, %v988, -inf
    %1017 = vmax.xlane.f32.xlu0 %v1016
    %v1018 = vpop.xlane.xlu0 %1017
    %v1019 = vsel %vm82, %v993, -inf
    %1020 = vmax.xlane.f32.xlu0 %v1019
    %v1021 = vpop.xlane.xlu0 %1020
    %v1022 = vsel %vm82, %v996, -inf
    %1023 = vmax.xlane.f32.xlu0 %v1022
    %v1024 = vpop.xlane.xlu0 %1023
    %v1025 = vsel %vm82, %v1001, -inf
    %1026 = vmax.xlane.f32.xlu0 %v1025
    %v1027 = vpop.xlane.xlu0 %1026
    %v1028 = vsel %vm82, %v1004, -inf
    %1029 = vmax.xlane.f32.xlu0 %v1028
    %v1030 = vpop.xlane.xlu0 %1029
    %v1031 = vsub.f32 %v977, %v1009
    %v1032 = vsub.f32 %v980, %v1012
    %v1033 = vsub.f32 %v985, %v1015
    %v1034 = vsub.f32 %v988, %v1018
    %v1035 = vsub.f32 %v993, %v1021
    %v1036 = vsub.f32 %v996, %v1024
    %v1037 = vsub.f32 %v1001, %v1027
    %v1038 = vsub.f32 %v1004, %v1030
    %v1039 = vmul.f32 %v1031, 1.442695
    %v1040 = vpow.pop %v1039
    %v1041 = vmul.f32 %v1032, 1.442695
    %v1042 = vpow.pop %v1041
    %v1043 = vmul.f32 %v1033, 1.442695
    %v1044 = vpow.pop %v1043
    %v1045 = vmul.f32 %v1034, 1.442695
    %v1046 = vpow.pop %v1045
    %v1047 = vmul.f32 %v1035, 1.442695
    %v1048 = vpow.pop %v1047
    %v1049 = vmul.f32 %v1036, 1.442695
    %v1050 = vpow.pop %v1049
    %v1051 = vmul.f32 %v1037, 1.442695
    %v1052 = vpow.pop %v1051
    %v1053 = vmul.f32 %v1038, 1.442695
    %v1054 = vpow.pop %v1053
    %v1055 = vsel %vm82, %v1040, 0.0
    %1056 = vadd.xlane.f32.xlu0 %v1055
    %v1057 = vpop.xlane.xlu0 %1056
    %v1058 = vsel %vm82, %v1042, 0.0
    %1059 = vadd.xlane.f32.xlu0 %v1058
    %v1060 = vpop.xlane.xlu0 %1059
    %v1061 = vsel %vm82, %v1044, 0.0
    %1062 = vadd.xlane.f32.xlu0 %v1061
    %v1063 = vpop.xlane.xlu0 %1062
    %v1064 = vsel %vm82, %v1046, 0.0
    %1065 = vadd.xlane.f32.xlu0 %v1064
    %v1066 = vpop.xlane.xlu0 %1065
    %v1067 = vsel %vm82, %v1048, 0.0
    %1068 = vadd.xlane.f32.xlu0 %v1067
    %v1069 = vpop.xlane.xlu0 %1068
    %v1070 = vsel %vm82, %v1050, 0.0
    %1071 = vadd.xlane.f32.xlu0 %v1070
    %v1072 = vpop.xlane.xlu0 %1071
    %v1073 = vsel %vm82, %v1052, 0.0
    %1074 = vadd.xlane.f32.xlu0 %v1073
    %v1075 = vpop.xlane.xlu0 %1074
    %v1076 = vsel %vm82, %v1054, 0.0
    %1077 = vadd.xlane.f32.xlu0 %v1076
    %v1078 = vpop.xlane.xlu0 %1077
    %v1079 = vrcp.pop %v1057
    %v1080 = vrcp.pop %v1060
    %v1081 = vrcp.pop %v1063
    %v1082 = vrcp.pop %v1066
    %v1083 = vrcp.pop %v1069
    %v1084 = vrcp.pop %v1072
    %v1085 = vrcp.pop %v1075
    %v1086 = vrcp.pop %v1078
    %v1087 = vmul.f32 %v1040, %v1079
    %v1088 = vmul.f32 %v1042, %v1080
    %v1089 = vmul.f32 %v1044, %v1081
    %v1090 = vmul.f32 %v1046, %v1082
    %v1091 = vmul.f32 %v1048, %v1083
    %v1092 = vmul.f32 %v1050, %v1084
    %v1093 = vmul.f32 %v1052, %v1085
    %v1094 = vmul.f32 %v1054, %v1086
    %v1095 = vpack.c.bf16 %v1088, %v1087
    %v1096 = vpack.c.bf16 %v1090, %v1089
    %v1097 = vpack.c.bf16 %v1092, %v1091
    %v1098 = vpack.c.bf16 %v1094, %v1093
    %1099 = vrot.lane.b32.xlu0 %v919, 64
    %v1100 = vpop.permute.xlu0 %1099
    %v1103 = vsel %vm82, %v1095, 0
    %v1106 = vsel %vm82, %v1096, 0
    %v1109 = vsel %vm82, %v1097, 0
    %v1112 = vsel %vm82, %v1098, 0
    %1114 = vmatprep.subr.bf16.mxu0 0
    %1115 = vmatpush1.bf16.msra.mxu0 %v1100
    %1116 = vmatprep.subr.bf16.mxu0 0
    %1117 = vmatpush1.bf16.msra.mxu0 0
    %1118 = vmatprep.subr.bf16.mxu0 0
    %1119 = vmatpush1.bf16.msra.mxu0 0
    %1120 = vmatprep.subr.bf16.mxu0 0
    %1121 = vmatpush1.bf16.msra.mxu0 0
    %1122 = vmatprep.subr.bf16.mxu0 0
    %1123 = vmatpush1.bf16.msra.mxu0 0
    %1124 = vmatprep.subr.bf16.mxu0 0
    %1125 = vmatpush1.bf16.msra.mxu0 0
    %1126 = vmatprep.subr.bf16.mxu0 0
    %1127 = vmatpush1.bf16.msra.mxu0 0
    %1128 = vmatprep.subr.bf16.mxu0 0
    %1129 = vmatpush1.bf16.msra.mxu0 0
    %1130 = vmatprep.subr.bf16.mxu0 0
    %1131 = vmatpush1.bf16.msra.mxu0 0
    %1132 = vmatprep.subr.bf16.mxu0 0
    %1133 = vmatpush1.bf16.msra.mxu0 0
    %1134 = vmatprep.subr.bf16.mxu0 0
    %1135 = vmatpush1.bf16.msra.mxu0 0
    %1136 = vmatprep.subr.bf16.mxu0 0
    %1137 = vmatpush1.bf16.msra.mxu0 0
    %1138 = vmatprep.subr.bf16.mxu0 0
    %1139 = vmatpush1.bf16.msra.mxu0 0
    %1140 = vmatprep.subr.bf16.mxu0 0
    %1141 = vmatpush1.bf16.msra.mxu0 0
    %1142 = vmatprep.subr.bf16.mxu0 0
    %1143 = vmatpush1.bf16.msra.mxu0 0
    %1144 = vmatprep.subr.bf16.mxu0 0
    %1145 = vmatpush1.bf16.msra.mxu0 0
    %1146 = vmatprep.mubr.bf16.mxu0 0
    %1147 = vmatmul.mubr.bf16.gmra.mrb[0].mxu0 %v1103
    %v1148 = vpop.f32.mrb[0].mxu0
    %v1149 = vadd.f32 0.0, %v1148
    %v1150 = vpop.f32.mrb[0].mxu0
    %v1151 = vpop.f32.mrb[0].mxu0
    %v1152 = vadd.f32 0.0, %v1151
    %v1153 = vpop.f32.mrb[0].mxu0
    %1154 = vmatprep.mubr.bf16.mxu0 0
    %1155 = vmatmul.mubr.bf16.gmra.mrb[0].mxu0 %v1106
    %v1156 = vpop.f32.mrb[0].mxu0
    %v1157 = vadd.f32 0.0, %v1156
    %v1158 = vpop.f32.mrb[0].mxu0
    %v1159 = vpop.f32.mrb[0].mxu0
    %v1160 = vadd.f32 0.0, %v1159
    %v1161 = vpop.f32.mrb[0].mxu0
    %1162 = vmatprep.mubr.bf16.mxu0 0
    %1163 = vmatmul.mubr.bf16.gmra.mrb[0].mxu0 %v1109
    %v1164 = vpop.f32.mrb[0].mxu0
    %v1165 = vadd.f32 0.0, %v1164
    %v1166 = vpop.f32.mrb[0].mxu0
    %v1167 = vpop.f32.mrb[0].mxu0
    %v1168 = vadd.f32 0.0, %v1167
    %v1169 = vpop.f32.mrb[0].mxu0
    %1170 = vmatprep.mubr.bf16.mxu0 0
    %1171 = vmatmul.mubr.bf16.gmra.mrb[0].mxu0 %v1112
    %v1172 = vpop.f32.mrb[0].mxu0
    %v1173 = vadd.f32 0.0, %v1172
    %v1174 = vpop.f32.mrb[0].mxu0
    %v1175 = vpop.f32.mrb[0].mxu0
    %v1176 = vadd.f32 0.0, %v1175
    %v1177 = vpop.f32.mrb[0].mxu0
    %1178 = vdwg.mxu0
    %v1179 = vpack.c.bf16 %v1152, %v1149
    %v1180 = vpack.c.bf16 %v1160, %v1157
    %v1181 = vpack.c.bf16 %v1168, %v1165
    %v1182 = vpack.c.bf16 %v1176, %v1173
    %v1183 = vmul.bf16 %v1179, %v263
    %v1184 = vmul.bf16 %v1180, %v264
    %v1185 = vmul.bf16 %v1181, %v265
    %v1186 = vmul.bf16 %v1182, %v266
    %v1187 = vadd.bf16 %v1183, %v1184
    %v1188 = vadd.bf16 %v1187, %v1185
    %v1189 = vadd.bf16 %v1188, %v1186
    %v1190 = vld [vmem:[#allocation4 + $0xb0] sm:$0xf]
    %v1191 = vld [vmem:[#allocation4 + $0xb4] sm:$0xf]
    %v1192 = vld [vmem:[#allocation4 + $0xb8] sm:$0xf]
    %v1193 = vld [vmem:[#allocation4 + $0xbc] sm:$0xf]
    %v1194 = vld [vmem:[#allocation4 + $0x114] sm:$0x8]
    %v1195 = vunpack.c.l.bf16 %v1194
    %v1196 = vlaneseq
    %v1197 = vshrl.u32 %v1196, 7
    %v1198 = vsub.s32 6, %v1197
    %v1199 = vrot.slane %v1195, %v1198
    %v1204 = vunpack.c.l.b16 %v1190
    %v1205 = vunpack.c.l.b16 %v1191
    %v1206 = vunpack.c.l.b16 %v1192
    %v1207 = vunpack.c.l.b16 %v1193
    %v1208 = vpack.c.b16 %v1205, %v1204
    %v1209 = vpack.c.b16 %v1207, %v1206
    %v1213 = vsel %vm135, %v1189, 0
    %1215 = vmatprep.subr.bf16.mxu0 0
    %1216 = vmatpush1.bf16.msra.mxu0 %v1208
    %1217 = vmatprep.subr.bf16.mxu0 0
    %1218 = vmatpush1.bf16.msra.mxu0 %v1209
    %1219 = vmatprep.subr.bf16.mxu0 0
    %1220 = vmatpush1.bf16.msra.mxu0 0
    %1221 = vmatprep.subr.bf16.mxu0 0
    %1222 = vmatpush1.bf16.msra.mxu0 0
    %1223 = vmatprep.subr.bf16.mxu0 0
    %1224 = vmatpush1.bf16.msra.mxu0 0
    %1225 = vmatprep.subr.bf16.mxu0 0
    %1226 = vmatpush1.bf16.msra.mxu0 0
    %1227 = vmatprep.subr.bf16.mxu0 0
    %1228 = vmatpush1.bf16.msra.mxu0 0
    %1229 = vmatprep.subr.bf16.mxu0 0
    %1230 = vmatpush1.bf16.msra.mxu0 0
    %1231 = vmatprep.subr.bf16.mxu0 0
    %1232 = vmatpush1.bf16.msra.mxu0 0
    %1233 = vmatprep.subr.bf16.mxu0 0
    %1234 = vmatpush1.bf16.msra.mxu0 0
    %1235 = vmatprep.subr.bf16.mxu0 0
    %1236 = vmatpush1.bf16.msra.mxu0 0
    %1237 = vmatprep.subr.bf16.mxu0 0
    %1238 = vmatpush1.bf16.msra.mxu0 0
    %1239 = vmatprep.subr.bf16.mxu0 0
    %1240 = vmatpush1.bf16.msra.mxu0 0
    %1241 = vmatprep.subr.bf16.mxu0 0
    %1242 = vmatpush1.bf16.msra.mxu0 0
    %1243 = vmatprep.subr.bf16.mxu0 0
    %1244 = vmatpush1.bf16.msra.mxu0 0
    %1245 = vmatprep.subr.bf16.mxu0 0
    %1246 = vmatpush1.bf16.msra.mxu0 0
    %1247 = vmatprep.mubr.bf16.mxu0 0
    %1248 = vmatmul.mubr.bf16.gmra.mrb[0].mxu0 %v1213
    %v1249 = vpop.f32.mrb[0].mxu0
    %v1250 = vadd.f32 %v1199, %v1249
    %v1251 = vpop.f32.mrb[0].mxu0
    %v1252 = vpop.f32.mrb[0].mxu0
    %v1253 = vadd.f32 %v1199, %v1252
    %v1254 = vpop.f32.mrb[0].mxu0
    %1255 = vdwg.mxu0
    %v1256 = vadd.f32 %v852, %v1250
    %v1257 = vadd.f32 %v853, %v1253
    %v1258 = vld [vmem:[#allocation4 + $0x118] sm:$0x1]
    %v1259 = vunpack.c.l.bf16 %v1258
    %v1260 = vsel %vm135, %v1256, 0.0
    %1261 = vadd.xlane.f32.xlu0 %v1260
    %v1262 = vpop.xlane.xlu0 %1261
    %v1263 = vsel %vm135, %v1257, 0.0
    %1264 = vadd.xlane.f32.xlu0 %v1263
    %v1265 = vpop.xlane.xlu0 %1264
    %v1266 = vmul.f32 %v1262, %v142
    %v1267 = vmul.f32 %v1265, %v142
    %v1268 = vmul.f32 %v1256, %v1256
    %v1269 = vmul.f32 %v1257, %v1257
    %v1270 = vsel %vm135, %v1268, 0.0
    %1271 = vadd.xlane.f32.xlu0 %v1270
    %v1272 = vpop.xlane.xlu0 %1271
    %v1273 = vsel %vm135, %v1269, 0.0
    %1274 = vadd.xlane.f32.xlu0 %v1273
    %v1275 = vpop.xlane.xlu0 %1274
    %v1276 = vmul.f32 %v1272, %v142
    %v1277 = vmul.f32 %v1275, %v142
    %v1278 = vmul.f32 %v1266, %v1266
    %v1279 = vmul.f32 %v1267, %v1267
    %v1280 = vsub.f32 %v1276, %v1278
    %v1281 = vsub.f32 %v1277, %v1279
    %v1282 = vmax.f32 %v1280, 0.0
    %v1283 = vmax.f32 %v1281, 0.0
    %v1284 = vsub.f32 %v1256, %v1266
    %v1285 = vsub.f32 %v1257, %v1267
    %v1286 = vadd.f32 %v1282, 1e-05
    %v1287 = vadd.f32 %v1283, 1e-05
    %v1288 = vrsqrt.pop %v1286
    %v1289 = vrsqrt.pop %v1287
    %v1290 = vmul.f32 %v1284, %v1288
    %v1291 = vmul.f32 %v1285, %v1289
    %v1292 = vlaneseq
    %v1293 = vshrl.u32 %v1292, 7
    %v1294 = vsub.s32 7, %v1293
    %v1295 = vrot.slane %v1195, %v1294
    %v1296 = vmul.f32 %v1290, %v1295
    %v1297 = vmul.f32 %v1291, %v1295
    %v1298 = vlaneseq
    %v1299 = vshrl.u32 %v1298, 7
    %v1300 = vsub.s32 0, %v1299
    %v1301 = vrot.slane %v1259, %v1300
    %v1302 = vadd.f32 %v1296, %v1301
    %v1303 = vadd.f32 %v1297, %v1301
    %v1304 = vpack.c.bf16 %v1303, %v1302
    %v1305 = vld [vmem:[#allocation4 + $0xc0] sm:$0xf]
    %v1306 = vld [vmem:[#allocation4 + $0xc4] sm:$0xf]
    %v1307 = vld [vmem:[#allocation4 + $0xc8] sm:$0xf]
    %v1308 = vld [vmem:[#allocation4 + $0xcc] sm:$0xf]
    %v1309 = vlaneseq
    %v1310 = vshrl.u32 %v1309, 7
    %v1311 = vsub.s32 1, %v1310
    %v1312 = vrot.slane %v1259, %v1311
    %v1317 = vunpack.c.l.b16 %v1305
    %v1318 = vunpack.c.l.b16 %v1306
    %v1319 = vunpack.c.l.b16 %v1307
    %v1320 = vunpack.c.l.b16 %v1308
    %v1321 = vpack.c.b16 %v1318, %v1317
    %v1322 = vpack.c.b16 %v1320, %v1319
    %v1326 = vsel %vm135, %v1304, 0
    %1328 = vmatprep.subr.bf16.mxu0 0
    %1329 = vmatpush1.bf16.msra.mxu0 %v1321
    %1330 = vmatprep.subr.bf16.mxu0 0
    %1331 = vmatpush1.bf16.msra.mxu0 %v1322
    %1332 = vmatprep.subr.bf16.mxu0 0
    %1333 = vmatpush1.bf16.msra.mxu0 0
    %1334 = vmatprep.subr.bf16.mxu0 0
    %1335 = vmatpush1.bf16.msra.mxu0 0
    %1336 = vmatprep.subr.bf16.mxu0 0
    %1337 = vmatpush1.bf16.msra.mxu0 0
    %1338 = vmatprep.subr.bf16.mxu0 0
    %1339 = vmatpush1.bf16.msra.mxu0 0
    %1340 = vmatprep.subr.bf16.mxu0 0
    %1341 = vmatpush1.bf16.msra.mxu0 0
    %1342 = vmatprep.subr.bf16.mxu0 0
    %1343 = vmatpush1.bf16.msra.mxu0 0
    %1344 = vmatprep.subr.bf16.mxu0 0
    %1345 = vmatpush1.bf16.msra.mxu0 0
    %1346 = vmatprep.subr.bf16.mxu0 0
    %1347 = vmatpush1.bf16.msra.mxu0 0
    %1348 = vmatprep.subr.bf16.mxu0 0
    %1349 = vmatpush1.bf16.msra.mxu0 0
    %1350 = vmatprep.subr.bf16.mxu0 0
    %1351 = vmatpush1.bf16.msra.mxu0 0
    %1352 = vmatprep.subr.bf16.mxu0 0
    %1353 = vmatpush1.bf16.msra.mxu0 0
    %1354 = vmatprep.subr.bf16.mxu0 0
    %1355 = vmatpush1.bf16.msra.mxu0 0
    %1356 = vmatprep.subr.bf16.mxu0 0
    %1357 = vmatpush1.bf16.msra.mxu0 0
    %1358 = vmatprep.subr.bf16.mxu0 0
    %1359 = vmatpush1.bf16.msra.mxu0 0
    %1360 = vmatprep.mubr.bf16.mxu0 0
    %1361 = vmatmul.mubr.bf16.gmra.mrb[0].mxu0 %v1326
    %v1362 = vpop.f32.mrb[0].mxu0
    %v1363 = vadd.f32 %v1312, %v1362
    %v1364 = vpop.f32.mrb[0].mxu0
    %v1365 = vpop.f32.mrb[0].mxu0
    %v1366 = vadd.f32 %v1312, %v1365
    %v1367 = vpop.f32.mrb[0].mxu0
    %1368 = vdwg.mxu0
    %v1369 = vmax.f32 %v1363, 0.0
    %v1370 = vmax.f32 %v1366, 0.0
    %v1371 = vpack.c.bf16 %v1370, %v1369
    %v1372 = vld [vmem:[#allocation4 + $0xd0] sm:$0xf]
    %v1373 = vld [vmem:[#allocation4 + $0xd4] sm:$0xf]
    %v1374 = vld [vmem:[#allocation4 + $0xd8] sm:$0xf]
    %v1375 = vld [vmem:[#allocation4 + $0xdc] sm:$0xf]
    %v1376 = vld [vmem:[#allocation4 + $0xe0] sm:$0xf]
    %v1377 = vld [vmem:[#allocation4 + $0xe4] sm:$0xf]
    %v1378 = vld [vmem:[#allocation4 + $0xe8] sm:$0xf]
    %v1379 = vld [vmem:[#allocation4 + $0xec] sm:$0xf]
    %v1380 = vld [vmem:[#allocation4 + $0x118] sm:$0x2]
    %v1381 = vunpack.c.l.bf16 %v1380
    %v1382 = vlaneseq
    %v1383 = vshrl.u32 %v1382, 7
    %v1384 = vsub.s32 2, %v1383
    %v1385 = vrot.slane %v1381, %v1384
    %v1394 = vunpack.c.l.b16 %v1372
    %v1395 = vunpack.c.l.b16 %v1373
    %v1396 = vunpack.c.l.b16 %v1374
    %v1397 = vunpack.c.l.b16 %v1375
    %v1398 = vunpack.c.l.b16 %v1376
    %v1399 = vunpack.c.l.b16 %v1377
    %v1400 = vunpack.c.l.b16 %v1378
    %v1401 = vunpack.c.l.b16 %v1379
    %v1402 = vpack.c.b16 %v1395, %v1394
    %v1403 = vpack.c.b16 %v1397, %v1396
    %v1404 = vpack.c.b16 %v1399, %v1398
    %v1405 = vpack.c.b16 %v1401, %v1400
    %v1411 = vsel %vm761, %v1371, 0
    %1413 = vmatprep.subr.bf16.mxu0 0
    %1414 = vmatpush1.bf16.msra.mxu0 %v1402
    %1415 = vmatprep.subr.bf16.mxu0 0
    %1416 = vmatpush1.bf16.msra.mxu0 %v1403
    %1417 = vmatprep.subr.bf16.mxu0 0
    %1418 = vmatpush1.bf16.msra.mxu0 %v1404
    %1419 = vmatprep.subr.bf16.mxu0 0
    %1420 = vmatpush1.bf16.msra.mxu0 %v1405
    %1421 = vmatprep.subr.bf16.mxu0 0
    %1422 = vmatpush1.bf16.msra.mxu0 0
    %1423 = vmatprep.subr.bf16.mxu0 0
    %1424 = vmatpush1.bf16.msra.mxu0 0
    %1425 = vmatprep.subr.bf16.mxu0 0
    %1426 = vmatpush1.bf16.msra.mxu0 0
    %1427 = vmatprep.subr.bf16.mxu0 0
    %1428 = vmatpush1.bf16.msra.mxu0 0
    %1429 = vmatprep.subr.bf16.mxu0 0
    %1430 = vmatpush1.bf16.msra.mxu0 0
    %1431 = vmatprep.subr.bf16.mxu0 0
    %1432 = vmatpush1.bf16.msra.mxu0 0
    %1433 = vmatprep.subr.bf16.mxu0 0
    %1434 = vmatpush1.bf16.msra.mxu0 0
    %1435 = vmatprep.subr.bf16.mxu0 0
    %1436 = vmatpush1.bf16.msra.mxu0 0
    %1437 = vmatprep.subr.bf16.mxu0 0
    %1438 = vmatpush1.bf16.msra.mxu0 0
    %1439 = vmatprep.subr.bf16.mxu0 0
    %1440 = vmatpush1.bf16.msra.mxu0 0
    %1441 = vmatprep.subr.bf16.mxu0 0
    %1442 = vmatpush1.bf16.msra.mxu0 0
    %1443 = vmatprep.subr.bf16.mxu0 0
    %1444 = vmatpush1.bf16.msra.mxu0 0
    %1445 = vmatprep.mubr.bf16.mxu0 0
    %1446 = vmatmul.mubr.bf16.gmra.mrb[0].mxu0 %v1411
    %v1447 = vpop.f32.mrb[0].mxu0
    %v1448 = vadd.f32 %v1385, %v1447
    %v1449 = vpop.f32.mrb[0].mxu0
    %v1450 = vpop.f32.mrb[0].mxu0
    %v1451 = vadd.f32 %v1385, %v1450
    %v1452 = vpop.f32.mrb[0].mxu0
    %1453 = vdwg.mxu0
    %v1454 = vadd.f32 %v1302, %v1448
    %v1455 = vadd.f32 %v1303, %v1451
    %v1456 = vld [vmem:[#allocation4 + $0x118] sm:$0x4]
    %v1457 = vunpack.c.l.bf16 %v1456
    %v1458 = vsel %vm135, %v1454, 0.0
    %1459 = vadd.xlane.f32.xlu0 %v1458
    %v1460 = vpop.xlane.xlu0 %1459
    %v1461 = vsel %vm135, %v1455, 0.0
    %1462 = vadd.xlane.f32.xlu0 %v1461
    %v1463 = vpop.xlane.xlu0 %1462
    %v1464 = vmul.f32 %v1460, %v142
    %v1465 = vmul.f32 %v1463, %v142
    %v1466 = vmul.f32 %v1454, %v1454
    %v1467 = vmul.f32 %v1455, %v1455
    %v1468 = vsel %vm135, %v1466, 0.0
    %1469 = vadd.xlane.f32.xlu0 %v1468
    %v1470 = vpop.xlane.xlu0 %1469
    %v1471 = vsel %vm135, %v1467, 0.0
    %1472 = vadd.xlane.f32.xlu0 %v1471
    %v1473 = vpop.xlane.xlu0 %1472
    %v1474 = vmul.f32 %v1470, %v142
    %v1475 = vmul.f32 %v1473, %v142
    %v1476 = vmul.f32 %v1464, %v1464
    %v1477 = vmul.f32 %v1465, %v1465
    %v1478 = vsub.f32 %v1474, %v1476
    %v1479 = vsub.f32 %v1475, %v1477
    %v1480 = vmax.f32 %v1478, 0.0
    %v1481 = vmax.f32 %v1479, 0.0
    %v1482 = vsub.f32 %v1454, %v1464
    %v1483 = vsub.f32 %v1455, %v1465
    %v1484 = vadd.f32 %v1480, 1e-05
    %v1485 = vadd.f32 %v1481, 1e-05
    %v1486 = vrsqrt.pop %v1484
    %v1487 = vrsqrt.pop %v1485
    %v1488 = vmul.f32 %v1482, %v1486
    %v1489 = vmul.f32 %v1483, %v1487
    %v1490 = vlaneseq
    %v1491 = vshrl.u32 %v1490, 7
    %v1492 = vsub.s32 3, %v1491
    %v1493 = vrot.slane %v1381, %v1492
    %v1494 = vmul.f32 %v1488, %v1493
    %v1495 = vmul.f32 %v1489, %v1493
    %v1496 = vlaneseq
    %v1497 = vshrl.u32 %v1496, 7
    %v1498 = vsub.s32 4, %v1497
    %v1499 = vrot.slane %v1457, %v1498
    %v1500 = vadd.f32 %v1494, %v1499
    %v1501 = vadd.f32 %v1495, %v1499
    %v1502 = vld [vmem:[#allocation4 + $0x118] sm:$0x8]
    %v1503 = vunpack.c.l.bf16 %v1502
    %v1504 = vsel %vm135, %v1500, 0.0
    %1505 = vadd.xlane.f32.xlu0 %v1504
    %v1506 = vpop.xlane.xlu0 %1505
    %v1507 = vsel %vm135, %v1501, 0.0
    %1508 = vadd.xlane.f32.xlu0 %v1507
    %v1509 = vpop.xlane.xlu0 %1508
    %v1510 = vmul.f32 %v1506, %v142
    %v1511 = vmul.f32 %v1509, %v142
    %v1512 = vmul.f32 %v1500, %v1500
    %v1513 = vmul.f32 %v1501, %v1501
    %v1514 = vsel %vm135, %v1512, 0.0
    %1515 = vadd.xlane.f32.xlu0 %v1514
    %v1516 = vpop.xlane.xlu0 %1515
    %v1517 = vsel %vm135, %v1513, 0.0
    %1518 = vadd.xlane.f32.xlu0 %v1517
    %v1519 = vpop.xlane.xlu0 %1518
    %v1520 = vmul.f32 %v1516, %v142
    %v1521 = vmul.f32 %v1519, %v142
    %v1522 = vmul.f32 %v1510, %v1510
    %v1523 = vmul.f32 %v1511, %v1511
    %v1524 = vsub.f32 %v1520, %v1522
    %v1525 = vsub.f32 %v1521, %v1523
    %v1526 = vmax.f32 %v1524, 0.0
    %v1527 = vmax.f32 %v1525, 0.0
    %v1528 = vsub.f32 %v1500, %v1510
    %v1529 = vsub.f32 %v1501, %v1511
    %v1530 = vadd.f32 %v1526, 1e-05
    %v1531 = vadd.f32 %v1527, 1e-05
    %v1532 = vrsqrt.pop %v1530
    %v1533 = vrsqrt.pop %v1531
    %v1534 = vmul.f32 %v1528, %v1532
    %v1535 = vmul.f32 %v1529, %v1533
    %v1536 = vlaneseq
    %v1537 = vshrl.u32 %v1536, 7
    %v1538 = vsub.s32 5, %v1537
    %v1539 = vrot.slane %v1457, %v1538
    %v1540 = vmul.f32 %v1534, %v1539
    %v1541 = vmul.f32 %v1535, %v1539
    %v1542 = vlaneseq
    %v1543 = vshrl.u32 %v1542, 7
    %v1544 = vsub.s32 6, %v1543
    %v1545 = vrot.slane %v1503, %v1544
    %v1546 = vadd.f32 %v1540, %v1545
    %v1547 = vadd.f32 %v1541, %v1545
    %v1548 = vpack.c.bf16 %v1547, %v1546
    %v1550 = vsel %vm82, %v64, 0
    %1552 = vmatprep.subr.bf16.mxu0 0
    %1553 = vmatpush1.bf16.msra.mxu0 %v1548
    %1554 = vmatprep.subr.bf16.mxu0 0
    %1555 = vmatpush1.bf16.msra.mxu0 0
    %1556 = vmatprep.subr.bf16.mxu0 0
    %1557 = vmatpush1.bf16.msra.mxu0 0
    %1558 = vmatprep.subr.bf16.mxu0 0
    %1559 = vmatpush1.bf16.msra.mxu0 0
    %1560 = vmatprep.subr.bf16.mxu0 0
    %1561 = vmatpush1.bf16.msra.mxu0 0
    %1562 = vmatprep.subr.bf16.mxu0 0
    %1563 = vmatpush1.bf16.msra.mxu0 0
    %1564 = vmatprep.subr.bf16.mxu0 0
    %1565 = vmatpush1.bf16.msra.mxu0 0
    %1566 = vmatprep.subr.bf16.mxu0 0
    %1567 = vmatpush1.bf16.msra.mxu0 0
    %1568 = vmatprep.subr.bf16.mxu0 0
    %1569 = vmatpush1.bf16.msra.mxu0 0
    %1570 = vmatprep.subr.bf16.mxu0 0
    %1571 = vmatpush1.bf16.msra.mxu0 0
    %1572 = vmatprep.subr.bf16.mxu0 0
    %1573 = vmatpush1.bf16.msra.mxu0 0
    %1574 = vmatprep.subr.bf16.mxu0 0
    %1575 = vmatpush1.bf16.msra.mxu0 0
    %1576 = vmatprep.subr.bf16.mxu0 0
    %1577 = vmatpush1.bf16.msra.mxu0 0
    %1578 = vmatprep.subr.bf16.mxu0 0
    %1579 = vmatpush1.bf16.msra.mxu0 0
    %1580 = vmatprep.subr.bf16.mxu0 0
    %1581 = vmatpush1.bf16.msra.mxu0 0
    %1582 = vmatprep.subr.bf16.mxu0 0
    %1583 = vmatpush1.bf16.msra.mxu0 0
    %1584 = vmatprep.mubr.bf16.mxu0 0
    %1585 = vmatmul.mubr.bf16.gmra.mrb[0].mxu0 %v1550
    %v1586 = vpop.f32.mrb[0].mxu0
    %v1587 = vadd.f32 0.0, %v1586
    %v1588 = vpop.f32.mrb[0].mxu0
    %v1589 = vpop.f32.mrb[0].mxu0
    %v1590 = vpop.f32.mrb[0].mxu0
    %1591 = vdwg.mxu0
    %v1592 = vpack.c.bf16 %v1587, %v1587
    %v1593 = vld [vmem:[#allocation4 + $0xf0] sm:$0xf]
    %v1594 = vld [vmem:[#allocation4 + $0xf4] sm:$0xf]
    %v1595 = vld [vmem:[#allocation4 + $0xf8] sm:$0xf]
    %v1596 = vld [vmem:[#allocation4 + $0xfc] sm:$0xf]
    %v1597 = vlaneseq
    %v1598 = vshrl.u32 %v1597, 7
    %v1599 = vsub.s32 7, %v1598
    %v1600 = vrot.slane %v1503, %v1599
    %v1605 = vunpack.c.l.b16 %v1593
    %v1606 = vunpack.c.l.b16 %v1594
    %v1607 = vunpack.c.l.b16 %v1595
    %v1608 = vunpack.c.l.b16 %v1596
    %v1609 = vpack.c.b16 %v1606, %v1605
    %v1610 = vpack.c.b16 %v1608, %v1607
    %v1614 = vsel %vm135, %v1592, 0
    %1616 = vmatprep.subr.bf16.mxu0 0
    %1617 = vmatpush1.bf16.msra.mxu0 %v1609
    %1618 = vmatprep.subr.bf16.mxu0 0
    %1619 = vmatpush1.bf16.msra.mxu0 %v1610
    %1620 = vmatprep.subr.bf16.mxu0 0
    %1621 = vmatpush1.bf16.msra.mxu0 0
    %1622 = vmatprep.subr.bf16.mxu0 0
    %1623 = vmatpush1.bf16.msra.mxu0 0
    %1624 = vmatprep.subr.bf16.mxu0 0
    %1625 = vmatpush1.bf16.msra.mxu0 0
    %1626 = vmatprep.subr.bf16.mxu0 0
    %1627 = vmatpush1.bf16.msra.mxu0 0
    %1628 = vmatprep.subr.bf16.mxu0 0
    %1629 = vmatpush1.bf16.msra.mxu0 0
    %1630 = vmatprep.subr.bf16.mxu0 0
    %1631 = vmatpush1.bf16.msra.mxu0 0
    %1632 = vmatprep.subr.bf16.mxu0 0
    %1633 = vmatpush1.bf16.msra.mxu0 0
    %1634 = vmatprep.subr.bf16.mxu0 0
    %1635 = vmatpush1.bf16.msra.mxu0 0
    %1636 = vmatprep.subr.bf16.mxu0 0
    %1637 = vmatpush1.bf16.msra.mxu0 0
    %1638 = vmatprep.subr.bf16.mxu0 0
    %1639 = vmatpush1.bf16.msra.mxu0 0
    %1640 = vmatprep.subr.bf16.mxu0 0
    %1641 = vmatpush1.bf16.msra.mxu0 0
    %1642 = vmatprep.subr.bf16.mxu0 0
    %1643 = vmatpush1.bf16.msra.mxu0 0
    %1644 = vmatprep.subr.bf16.mxu0 0
    %1645 = vmatpush1.bf16.msra.mxu0 0
    %1646 = vmatprep.subr.bf16.mxu0 0
    %1647 = vmatpush1.bf16.msra.mxu0 0
    %1648 = vmatprep.mubr.bf16.mxu0 0
    %1649 = vmatmul.mubr.bf16.gmra.mrb[0].mxu0 %v1614
    %v1650 = vpop.f32.mrb[0].mxu0
    %v1651 = vadd.f32 %v1600, %v1650
    %v1652 = vpop.f32.mrb[0].mxu0
    %v1653 = vpop.f32.mrb[0].mxu0
    %v1654 = vpop.f32.mrb[0].mxu0
    %1655 = vdwg.mxu0
    %v1656 = vpack.c.bf16 %v1651, %v1651
    %v1657 = vld [vmem:[#allocation4 + $0x100] sm:$0xf]
    %v1658 = vld [vmem:[#allocation4 + $0x104] sm:$0xf]
    %v1659 = vld [vmem:[#allocation4 + $0x108] sm:$0xf]
    %v1660 = vld [vmem:[#allocation4 + $0x10c] sm:$0xf]
    %v1661 = vld [vmem:[#allocation4 + $0x11c] sm:$0x1]
    %v1662 = vunpack.c.l.bf16 %v1661
    %v1663 = vlaneseq
    %v1664 = vshrl.u32 %v1663, 7
    %v1665 = vsub.s32 0, %v1664
    %v1666 = vrot.slane %v1662, %v1665
    %v1671 = vunpack.c.l.b16 %v1657
    %v1672 = vunpack.c.l.b16 %v1658
    %v1673 = vunpack.c.l.b16 %v1659
    %v1674 = vunpack.c.l.b16 %v1660
    %v1675 = vpack.c.b16 %v1672, %v1671
    %v1676 = vpack.c.b16 %v1674, %v1673
    %v1680 = vsel %vm135, %v1656, 0
    %1682 = vmatprep.subr.bf16.mxu0 0
    %1683 = vmatpush1.bf16.msra.mxu0 %v1675
    %1684 = vmatprep.subr.bf16.mxu0 0
    %1685 = vmatpush1.bf16.msra.mxu0 %v1676
    %1686 = vmatprep.subr.bf16.mxu0 0
    %1687 = vmatpush1.bf16.msra.mxu0 0
    %1688 = vmatprep.subr.bf16.mxu0 0
    %1689 = vmatpush1.bf16.msra.mxu0 0
    %1690 = vmatprep.subr.bf16.mxu0 0
    %1691 = vmatpush1.bf16.msra.mxu0 0
    %1692 = vmatprep.subr.bf16.mxu0 0
    %1693 = vmatpush1.bf16.msra.mxu0 0
    %1694 = vmatprep.subr.bf16.mxu0 0
    %1695 = vmatpush1.bf16.msra.mxu0 0
    %1696 = vmatprep.subr.bf16.mxu0 0
    %1697 = vmatpush1.bf16.msra.mxu0 0
    %1698 = vmatprep.subr.bf16.mxu0 0
    %1699 = vmatpush1.bf16.msra.mxu0 0
    %1700 = vmatprep.subr.bf16.mxu0 0
    %1701 = vmatpush1.bf16.msra.mxu0 0
    %1702 = vmatprep.subr.bf16.mxu0 0
    %1703 = vmatpush1.bf16.msra.mxu0 0
    %1704 = vmatprep.subr.bf16.mxu0 0
    %1705 = vmatpush1.bf16.msra.mxu0 0
    %1706 = vmatprep.subr.bf16.mxu0 0
    %1707 = vmatpush1.bf16.msra.mxu0 0
    %1708 = vmatprep.subr.bf16.mxu0 0
    %1709 = vmatpush1.bf16.msra.mxu0 0
    %1710 = vmatprep.subr.bf16.mxu0 0
    %1711 = vmatpush1.bf16.msra.mxu0 0
    %1712 = vmatprep.subr.bf16.mxu0 0
    %1713 = vmatpush1.bf16.msra.mxu0 0
    %1714 = vmatprep.mubr.bf16.mxu0 0
    %1715 = vmatmul.mubr.bf16.gmra.mrb[0].mxu0 %v1680
    %v1716 = vpop.f32.mrb[0].mxu0
    %v1717 = vadd.f32 %v1666, %v1716
    %v1718 = vpop.f32.mrb[0].mxu0
    %v1719 = vpop.f32.mrb[0].mxu0
    %v1720 = vpop.f32.mrb[0].mxu0
    %1721 = vdwg.mxu0
    %v1722 = vmax.f32 %v1717, 0.0
    %v1723 = vand.u32 2147483647, %v1717
    %v1724 = vsub.f32 0.0, %v1723
    %v1725 = vmul.f32 %v1724, 1.442695
    %v1726 = vpow.pop %v1725
    %v1727 = vadd.f32 %v1726, 1.0
    %v1728 = vlog2.pop %v1727
    %v1729 = vmul.f32 %v1728, 0.6931472
    %v1730 = vmul.f32 -0.5, %v1726
    %v1731 = vadd.f32 %v1730, 1.0
    %v1732 = vmul.f32 %v1731, %v1726
    %v1733 = vand.u32 2147483647, %v1726
    %vm1734 = vcmp.lt.f32.partialorder %v1733, 0.0004427343
    %v1735 = vsel %vm1734, %v1732, %v1729
    %v1736 = vadd.f32 %v1722, %v1735
    %v1737 = vadd.f32 %v1736, 0.0001
    %1739 = vrot.lane.b32.xlu0 %v1717, 32
    %v1740 = vpop.permute.xlu0 %1739
    %1743 = vrot.lane.b32.xlu0 %v1737, 32
    %v1744 = vpop.permute.xlu0 %1743
    %v1746 = vsel %vm135, %v1651, %v1740
    %vm1747 = vcmask 326656
    %v1748 = vsel %vm1747, %v1746, %v1744
    %vm1749 = vcmask 386048
    %1750 = vst.msk [vmem:[%s2] sm:$0x3] %vm1749, %v1748
    // Predicated region
    $region18: #{plan_recognition_forward.1} parent=1 // pred_check
      _
    $region19: #{plan_recognition_forward.1} parent=1 // pred_check_branch
      %1752 = sbr.rel (0) target = $region21
    $region20: #{plan_recognition_forward.1} parent=1 // pred_region
      _
    $region21: #{plan_recognition_forward.1} parent=1 // pred_fallthru
      _
    // Predicated region
    $region22: #{plan_recognition_forward.1} parent=1 // pred_check
      _
    $region23: #{plan_recognition_forward.1} parent=1 // pred_check_branch
      %1754 = sbr.rel (0) target = $region25
    $region24: #{plan_recognition_forward.1} parent=1 // pred_region
      _
    $region25: #{plan_recognition_forward.1} parent=1 // pred_fallthru
      _
    %1755 = vsyncpa [#allocation3], 1
    %1756 = vsyncpa [#allocation5], 1

</llo_original>
